<compile_context>
chip_gen: v7x
topology: tpu7x:2x2x1
jax: 0.10.0
libtpu: 0.0.40
codegen_flags: <defaults>
</compile_context>

<pallas_src>
import jax
import jax.numpy as jnp
from jax.experimental import pallas as pl
from jax.experimental.pallas import tpu as pltpu


# ----------------------------- model sizes ---------------------------------
T = 4        # time steps
B = 8        # batch
A = 8        # action size
E = 32       # observation embedding size
S = 32       # stochastic state size
D = 64       # deterministic (GRU) state size
H = 32       # hidden size of the MLPs / rnn-input model
TB = T * B

SEQ_W = A + E + 2 * S          # 104 packed per-row input lanes [act|obs|eps_post|eps_prior]
OUT_W = 6 * S + D              # 256 packed output lanes

# weight-slab row blocks (bf16, 256 lanes wide)
ROW_GRU = 0      # 96 rows : fused GRU  [rz | i_n | h_n]
ROW_DET = 96     # 64 rows : [wq1_d | wp1]
ROW_H = 160      # 32 rows : [w_in_s | wq2 | wp2]
ROW_PRE = 192    # 40 rows : block-diag [w_in_a ; wq1_e]
WROWS = 240
WCOLS = 256


def _elu(x):
    # exact ELU; min() keeps exp() from overflowing on the discarded branch
    return jnp.where(x > 0, x, jnp.exp(jnp.minimum(x, 0.0)) - 1.0)


def _softplus(x):
    # numerically stable softplus (no log1p dependency)
    return jnp.maximum(x, 0.0) + jnp.log(1.0 + jnp.exp(-jnp.abs(x)))


def _sigmoid(x):
    # sigmoid via tanh (single EUP op, no overflow)
    return 0.5 * (jnp.tanh(0.5 * x) + 1.0)


# ------------------------------- kernel ------------------------------------
def rssm_rollout_kernel(seq_ref, st_ref, w_ref, b_ref, out_ref):
    f32 = jnp.float32
    bf16 = jnp.bfloat16

    # ---- prologue: batched non-recurrent contractions over all T*B rows ----
    # seq lanes: [act 0:8 | obs 8:40 | eps_post 40:72 | eps_prior 72:104]
    act_obs = seq_ref[:, 0:A + E].astype(bf16)                       # (TB, 40)
    w_pre = w_ref[ROW_PRE:ROW_PRE + A + E, 0:2 * H]                  # (40, 64) block-diag
    b_pre = b_ref[1:2, 160:160 + 2 * H]                              # (1, 64)  [b_in | bq1]
    pre_all = jnp.dot(act_obs, w_pre, preferred_element_type=f32) + b_pre   # (TB, 64)

    # ---- hoist only the 4x-reused GRU constants (small vreg footprint) ----
    w_gru = w_ref[ROW_GRU:ROW_GRU + H + D, :]                        # (96, 256) bf16
    b_rz = b_ref[0:1, 0:2 * D]                                       # (1, 128)
    b_ihn = b_ref[0:1, 2 * D:3 * D]                                  # (1, 64)
    b_hhn = b_ref[0:1, 3 * D:4 * D]                                  # (1, 64)

    prev_stoch = st_ref[:, 0:S]                                      # (B, 32)
    prev_deter = st_ref[:, S:S + D]                                  # (B, 64)

    zeros_prior = jnp.zeros((B, 3 * S), f32)                         # hoisted pad broadcast
    deters = []

    # Serial recurrence: fully unrolled static time loop (T = 4).
    for t in range(T):
        r0 = t * B
        pre = pre_all[r0:r0 + B]                                     # (B, 64)
        rnn_pre = pre[:, 0:H]                                        # act @ w_in_a + b_in
        q_pre = pre[:, H:2 * H]                                      # obs @ wq1_e + bq1
        eps_q = seq_ref[r0:r0 + B, A + E:A + E + S]                  # (B, 32)

        # ---- transition model: rnn input ----
        rnn_in = _elu(
            jnp.dot(prev_stoch.astype(bf16), w_ref[ROW_H:ROW_H + H, 0:H],
                    preferred_element_type=f32) + rnn_pre)           # (B, H)

        # ---- fused GRU: one (B,96)x(96,256) dot -> [rz | i_n | h_n] ----
        x = jnp.concatenate([rnn_in, prev_deter], axis=-1).astype(bf16)   # (B, 96)
        g = jnp.dot(x, w_gru, preferred_element_type=f32)                 # (B, 256)
        rz = _sigmoid(g[:, 0:2 * D] + b_rz)
        r = rz[:, 0:D]
        z = rz[:, D:2 * D]
        n = jnp.tanh(g[:, 2 * D:3 * D] + b_ihn + r * (g[:, 3 * D:4 * D] + b_hhn))
        deter = (1.0 - z) * n + z * prev_deter                       # (B, D)

        # ---- posterior head (on critical path: q_stoch feeds forward) ----
        qh = _elu(
            jnp.dot(deter.astype(bf16), w_ref[ROW_DET:ROW_DET + D, 0:H],
                    preferred_element_type=f32) + q_pre)             # (B, H)
        qo = jnp.dot(qh.astype(bf16), w_ref[ROW_H:ROW_H + H, H:H + 2 * S],
                     preferred_element_type=f32) + b_ref[1:2, 0:2 * S]    # (B, 64)
        q_mean = qo[:, 0:S]
        q_std = _softplus(qo[:, S:2 * S]) + 0.1
        q_stoch = q_mean + q_std * eps_q

        # ---- one lane-dense 2-vreg store per step (prior lanes filled in epilogue) ----
        out_ref[r0:r0 + B, :] = jnp.concatenate(
            [q_mean, q_std, q_stoch, deter, zeros_prior], axis=-1)

        deters.append(deter)
        prev_stoch = q_stoch
        prev_deter = deter

    # ---- epilogue: prior head batched over all T*B rows (off the serial chain) ----
    deter_all = jnp.concatenate(deters, axis=0)                      # (TB, 64)
    eps_p_all = seq_ref[:, A + E + S:A + E + 2 * S]                  # (TB, 32)
    wp1 = w_ref[ROW_DET:ROW_DET + D, H:2 * H]                        # (64, 32)
    wp2 = w_ref[ROW_H:ROW_H + H, H + 2 * S:H + 4 * S]                # (32, 64)
    bp1 = b_ref[1:2, 2 * S:2 * S + H]                                # (1, 32)
    bp2 = b_ref[1:2, 2 * S + H:4 * S + H]                            # (1, 64)
    ph = _elu(jnp.dot(deter_all.astype(bf16), wp1, preferred_element_type=jnp.float32) + bp1)
    po = jnp.dot(ph.astype(bf16), wp2, preferred_element_type=jnp.float32) + bp2
    p_mean = po[:, 0:S]
    p_std = _softplus(po[:, S:2 * S]) + 0.1
    p_stoch = p_mean + p_std * eps_p_all
    out_ref[:, 3 * S + D:] = jnp.concatenate([p_mean, p_std, p_stoch], axis=-1)


# --------------------------- parameter packing -------------------------------
def _pack_params(p):
    f32 = jnp.float32
    w_in, b_in = p["w_in"], p["b_in"]          # (A+S, H), (1, H)
    w_ih, b_ih = p["w_ih"], p["b_ih"]          # (H, 3D), (1, 3D)   gates [r|z|n]
    w_hh, b_hh = p["w_hh"], p["b_hh"]          # (D, 3D), (1, 3D)
    wq1, bq1 = p["wq1"], p["bq1"]              # (D+E, H), (1, H)
    wq2, bq2 = p["wq2"], p["bq2"]              # (H, 2S), (1, 2S)
    wp1, bp1 = p["wp1"], p["bp1"]              # (D, H), (1, H)
    wp2, bp2 = p["wp2"], p["bp2"]              # (H, 2S), (1, 2S)

    w_in_a, w_in_s = w_in[:A], w_in[A:]
    wq1_d, wq1_e = wq1[:D], wq1[D:]

    W = jnp.zeros((WROWS, WCOLS), f32)
    # fused GRU block: LHS = [rnn_in | prev_deter], cols = [rz | i_n | h_n]
    W = W.at[0:H, 0:2 * D].set(w_ih[:, 0:2 * D])
    W = W.at[H:H + D, 0:2 * D].set(w_hh[:, 0:2 * D])
    W = W.at[0:H, 2 * D:3 * D].set(w_ih[:, 2 * D:3 * D])
    W = W.at[H:H + D, 3 * D:4 * D].set(w_hh[:, 2 * D:3 * D])
    # deter-consumer block
    W = W.at[ROW_DET:ROW_DET + D, 0:H].set(wq1_d)
    W = W.at[ROW_DET:ROW_DET + D, H:2 * H].set(wp1)
    # H-row block
    W = W.at[ROW_H:ROW_H + H, 0:H].set(w_in_s)
    W = W.at[ROW_H:ROW_H + H, H:H + 2 * S].set(wq2)
    W = W.at[ROW_H:ROW_H + H, H + 2 * S:H + 4 * S].set(wp2)
    # prologue block-diag [w_in_a ; wq1_e] acting on [act | obs]
    W = W.at[ROW_PRE:ROW_PRE + A, 0:H].set(w_in_a)
    W = W.at[ROW_PRE + A:ROW_PRE + A + E, H:2 * H].set(wq1_e)

    Bs = jnp.zeros((8, WCOLS), f32)
    Bs = Bs.at[0, 0:2 * D].set(b_ih[0, 0:2 * D] + b_hh[0, 0:2 * D])   # folded r/z bias
    Bs = Bs.at[0, 2 * D:3 * D].set(b_ih[0, 2 * D:3 * D])              # b_ihn
    Bs = Bs.at[0, 3 * D:4 * D].set(b_hh[0, 2 * D:3 * D])              # b_hhn
    Bs = Bs.at[1, 0:2 * S].set(bq2[0])
    Bs = Bs.at[1, 2 * S:2 * S + H].set(bp1[0])
    Bs = Bs.at[1, 2 * S + H:4 * S + H].set(bp2[0])
    Bs = Bs.at[1, 160:160 + H].set(b_in[0])
    Bs = Bs.at[1, 160 + H:160 + 2 * H].set(bq1[0])
    return W.astype(jnp.bfloat16), Bs


# ------------------------------ wrapper -------------------------------------
def representation_iterator(observations, actions, eps_prior, eps_post,
                            start_stoch, start_deter, params):
    """Returns (prior, posterior) dicts of stacked (T, B, *) arrays."""
    f32 = jnp.float32
    Wslab, Bslab = _pack_params(params)

    # one lane-dense (T*B, 104) input slab: [act | obs | eps_post | eps_prior]
    seq = jnp.concatenate([actions, observations, eps_post, eps_prior],
                          axis=-1).reshape(TB, SEQ_W).astype(f32)
    st0 = jnp.concatenate([start_stoch, start_deter], axis=-1).astype(f32)   # (B, 96)

    out = pl.pallas_call(
        rssm_rollout_kernel,
        out_shape=jax.ShapeDtypeStruct((TB, OUT_W), f32),
        in_specs=[pl.BlockSpec(memory_space=pltpu.MemorySpace.VMEM)] * 4,
        out_specs=pl.BlockSpec(memory_space=pltpu.MemorySpace.VMEM),
    )(seq, st0, Wslab, Bslab)

    out = out.reshape(T, B, OUT_W)
    deter = out[..., 3 * S:3 * S + D]
    posterior = {"mean": out[..., 0:S], "std": out[..., S:2 * S],
                 "stoch": out[..., 2 * S:3 * S], "deter": deter}
    prior = {"mean": out[..., 3 * S + D:4 * S + D],
             "std": out[..., 4 * S + D:5 * S + D],
             "stoch": out[..., 5 * S + D:6 * S + D], "deter": deter}
    return prior, posterior


# --------------------------- pure-JAX reference ------------------------------
def reference(observations, actions, eps_prior, eps_post,
              start_stoch, start_deter, p):
    prev_s, prev_d = start_stoch, start_deter
    priors, posts = [], []
    for t in range(T):
        act, obs = actions[t], observations[t]
        rnn_in = _elu(jnp.concatenate([act, prev_s], -1) @ p["w_in"] + p["b_in"])
        gi = rnn_in @ p["w_ih"] + p["b_ih"]
        gh = prev_d @ p["w_hh"] + p["b_hh"]
        r = jax.nn.sigmoid(gi[:, :D] + gh[:, :D])
        z = jax.nn.sigmoid(gi[:, D:2 * D] + gh[:, D:2 * D])
        n = jnp.tanh(gi[:, 2 * D:] + r * gh[:, 2 * D:])
        deter = (1 - z) * n + z * prev_d
        po = _elu(deter @ p["wp1"] + p["bp1"]) @ p["wp2"] + p["bp2"]
        pm, pstd = po[:, :S], _softplus(po[:, S:]) + 0.1
        pst = pm + pstd * eps_prior[t]
        qo = _elu(jnp.concatenate([deter, obs], -1) @ p["wq1"] + p["bq1"]) @ p["wq2"] + p["bq2"]
        qm, qstd = qo[:, :S], _softplus(qo[:, S:]) + 0.1
        qst = qm + qstd * eps_post[t]
        priors.append((pm, pstd, pst, deter))
        posts.append((qm, qstd, qst, deter))
        prev_s, prev_d = qst, deter
    stack = lambda xs, i: jnp.stack([x[i] for x in xs], 0)
    keys = ["mean", "std", "stoch", "deter"]
    return ({k: stack(priors, i) for i, k in enumerate(keys)},
            {k: stack(posts, i) for i, k in enumerate(keys)})


# ------------------------------- main ---------------------------------------
if __name__ == "__main__":
    key = jax.random.PRNGKey(0)
    ks = jax.random.split(key, 20)
    f32 = jnp.float32

    def init(k, shape, scale=0.1):
        return (scale * jax.random.normal(k, shape)).astype(f32)

    params = {
        # rnn input model: Linear(A+S -> H)
        "w_in": init(ks[0], (A + S, H)), "b_in": init(ks[1], (1, H)),
        # GRUCell(H -> D): gates ordered [r, z, n]
        "w_ih": init(ks[2], (H, 3 * D)), "b_ih": init(ks[3], (1, 3 * D)),
        "w_hh": init(ks[4], (D, 3 * D)), "b_hh": init(ks[5], (1, 3 * D)),
        # prior head: Linear(D -> H), Linear(H -> 2S)
        "wp1": init(ks[6], (D, H)), "bp1": init(ks[7], (1, H)),
        "wp2": init(ks[8], (H, 2 * S)), "bp2": init(ks[9], (1, 2 * S)),
        # posterior head: Linear(D+E -> H), Linear(H -> 2S)
        "wq1": init(ks[10], (D + E, H)), "bq1": init(ks[11], (1, H)),
        "wq2": init(ks[12], (H, 2 * S)), "bq2": init(ks[13], (1, 2 * S)),
    }

    observations = jax.random.normal(ks[14], (T, B, E), dtype=f32)
    actions = jax.random.normal(ks[15], (T, B, A), dtype=f32)
    eps_prior = jax.random.normal(ks[16], (T, B, S), dtype=f32)
    eps_post = jax.random.normal(ks[17], (T, B, S), dtype=f32)
    start_stoch = jax.random.normal(ks[18], (B, S), dtype=f32)
    start_deter = jax.random.normal(ks[19], (B, D), dtype=f32)

    run = jax.jit(representation_iterator)
    prior, posterior = run(observations, actions, eps_prior, eps_post,
                           start_stoch, start_deter, params)
    jax.block_until_ready(prior)
    jax.block_until_ready(posterior)

    ref_prior, ref_post = reference(
        observations, actions, eps_prior, eps_post, start_stoch, start_deter, params
    )
    # bf16 MXU operands + f32 accumulation / elementwise: tolerance absorbs it.
    for k in ["mean", "std", "stoch", "deter"]:
        assert jnp.all(jnp.isfinite(prior[k])) and jnp.all(jnp.isfinite(posterior[k]))
        assert jnp.allclose(prior[k], ref_prior[k], rtol=2e-2, atol=2e-2), k
        assert jnp.allclose(posterior[k], ref_post[k], rtol=2e-2, atol=2e-2), k

    print("KERNEL_OK")
</pallas_src>

<mosaic_0001>
module attributes {stable_mosaic.version = 11 : i64} {
  func.func @rssm_rollout_kernel(%arg0: memref<32x104xf32, #tpu.memory_space<vmem>>, %arg1: memref<8x96xf32, #tpu.memory_space<vmem>>, %arg2: memref<240x256xbf16, #tpu.memory_space<vmem>>, %arg3: memref<8x256xf32, #tpu.memory_space<vmem>>, %arg4: memref<32x256xf32, #tpu.memory_space<vmem>>) attributes {dimension_semantics = [], scalar_prefetch = 0 : i64, scratch_operands = 0 : i64, tpu.core_type = #tpu.core_type<tc>} {
    %c0 = arith.constant 0 : index
    %c0_0 = arith.constant 0 : index
    %0 = vector.load %arg0[%c0, %c0_0] : memref<32x104xf32, #tpu.memory_space<vmem>>, vector<32x40xf32>
    %1 = arith.truncf %0 : vector<32x40xf32> to vector<32x40xbf16>
    %c192 = arith.constant 192 : index
    %c0_1 = arith.constant 0 : index
    %2 = vector.load %arg2[%c192, %c0_1] : memref<240x256xbf16, #tpu.memory_space<vmem>>, vector<40x64xbf16>
    %c1 = arith.constant 1 : index
    %c160 = arith.constant 160 : index
    %3 = vector.load %arg3[%c1, %c160] : memref<8x256xf32, #tpu.memory_space<vmem>>, vector<1x64xf32>
    %cst = arith.constant dense<0.000000e+00> : vector<32x64xf32>
    %4 = tpu.matmul %1, %2, %cst {dimension_numbers = #tpu.dot_dimension_numbers<[1], [0], [0], [1], [0, 0, 1, 1], [], []>} : vector<32x40xbf16>, vector<40x64xbf16>, vector<32x64xf32> -> vector<32x64xf32>
    %5 = vector.broadcast %3 : vector<1x64xf32> to vector<32x64xf32>
    %6 = arith.addf %4, %5 : vector<32x64xf32>
    %c0_2 = arith.constant 0 : index
    %c0_3 = arith.constant 0 : index
    %7 = vector.load %arg2[%c0_2, %c0_3] : memref<240x256xbf16, #tpu.memory_space<vmem>>, vector<96x256xbf16>
    %c0_4 = arith.constant 0 : index
    %c0_5 = arith.constant 0 : index
    %8 = vector.load %arg3[%c0_4, %c0_5] : memref<8x256xf32, #tpu.memory_space<vmem>>, vector<1x128xf32>
    %c0_6 = arith.constant 0 : index
    %c128 = arith.constant 128 : index
    %9 = vector.load %arg3[%c0_6, %c128] : memref<8x256xf32, #tpu.memory_space<vmem>>, vector<1x64xf32>
    %c0_7 = arith.constant 0 : index
    %c192_8 = arith.constant 192 : index
    %10 = vector.load %arg3[%c0_7, %c192_8] : memref<8x256xf32, #tpu.memory_space<vmem>>, vector<1x64xf32>
    %c0_9 = arith.constant 0 : index
    %c0_10 = arith.constant 0 : index
    %11 = vector.load %arg1[%c0_9, %c0_10] : memref<8x96xf32, #tpu.memory_space<vmem>>, vector<8x32xf32>
    %c0_11 = arith.constant 0 : index
    %c32 = arith.constant 32 : index
    %12 = vector.load %arg1[%c0_11, %c32] : memref<8x96xf32, #tpu.memory_space<vmem>>, vector<8x64xf32>
    %cst_12 = arith.constant 0.000000e+00 : f32
    %13 = vector.broadcast %cst_12 : f32 to vector<8x96xf32>
    %14 = vector.extract_strided_slice %6 {offsets = [0, 0], sizes = [8, 64], strides = [1, 1]} : vector<32x64xf32> to vector<8x64xf32>
    %15 = vector.extract_strided_slice %14 {offsets = [0, 0], sizes = [8, 32], strides = [1, 1]} : vector<8x64xf32> to vector<8x32xf32>
    %16 = vector.extract_strided_slice %14 {offsets = [0, 32], sizes = [8, 32], strides = [1, 1]} : vector<8x64xf32> to vector<8x32xf32>
    %c0_13 = arith.constant 0 : index
    %c40 = arith.constant 40 : index
    %17 = vector.load %arg0[%c0_13, %c40] : memref<32x104xf32, #tpu.memory_space<vmem>>, vector<8x32xf32>
    %18 = arith.truncf %11 : vector<8x32xf32> to vector<8x32xbf16>
    %c160_14 = arith.constant 160 : index
    %c0_15 = arith.constant 0 : index
    %19 = vector.load %arg2[%c160_14, %c0_15] : memref<240x256xbf16, #tpu.memory_space<vmem>>, vector<32x32xbf16>
    %cst_16 = arith.constant dense<0.000000e+00> : vector<8x32xf32>
    %20 = tpu.matmul %18, %19, %cst_16 {dimension_numbers = #tpu.dot_dimension_numbers<[1], [0], [0], [1], [0, 0, 1, 1], [], []>} : vector<8x32xbf16>, vector<32x32xbf16>, vector<8x32xf32> -> vector<8x32xf32>
    %21 = arith.addf %20, %15 : vector<8x32xf32>
    %cst_17 = arith.constant 0.000000e+00 : f32
    %22 = vector.broadcast %cst_17 : f32 to vector<8x32xf32>
    %23 = arith.cmpf ogt, %21, %22 : vector<8x32xf32>
    %cst_18 = arith.constant 0.000000e+00 : f32
    %24 = vector.broadcast %cst_18 : f32 to vector<8x32xf32>
    %25 = arith.minimumf %21, %24 : vector<8x32xf32>
    %26 = math.exp %25 : vector<8x32xf32>
    %cst_19 = arith.constant 1.000000e+00 : f32
    %27 = vector.broadcast %cst_19 : f32 to vector<8x32xf32>
    %28 = arith.subf %26, %27 : vector<8x32xf32>
    %29 = arith.select %23, %21, %28 : vector<8x32xi1>, vector<8x32xf32>
    %30 = tpu.concatenate %29, %12 in 1 : vector<8x32xf32>, vector<8x64xf32> -> vector<8x96xf32>
    %31 = arith.truncf %30 : vector<8x96xf32> to vector<8x96xbf16>
    %cst_20 = arith.constant dense<0.000000e+00> : vector<8x256xf32>
    %32 = tpu.matmul %31, %7, %cst_20 {dimension_numbers = #tpu.dot_dimension_numbers<[1], [0], [0], [1], [0, 0, 1, 1], [], []>} : vector<8x96xbf16>, vector<96x256xbf16>, vector<8x256xf32> -> vector<8x256xf32>
    %33 = vector.extract_strided_slice %32 {offsets = [0, 0], sizes = [8, 128], strides = [1, 1]} : vector<8x256xf32> to vector<8x128xf32>
    %34 = vector.broadcast %8 : vector<1x128xf32> to vector<8x128xf32>
    %35 = arith.addf %33, %34 : vector<8x128xf32>
    %cst_21 = arith.constant 5.000000e-01 : f32
    %36 = vector.broadcast %cst_21 : f32 to vector<8x128xf32>
    %37 = arith.mulf %36, %35 : vector<8x128xf32>
    %38 = math.tanh %37 : vector<8x128xf32>
    %cst_22 = arith.constant 1.000000e+00 : f32
    %39 = vector.broadcast %cst_22 : f32 to vector<8x128xf32>
    %40 = arith.addf %38, %39 : vector<8x128xf32>
    %cst_23 = arith.constant 5.000000e-01 : f32
    %41 = vector.broadcast %cst_23 : f32 to vector<8x128xf32>
    %42 = arith.mulf %41, %40 : vector<8x128xf32>
    %43 = vector.extract_strided_slice %42 {offsets = [0, 0], sizes = [8, 64], strides = [1, 1]} : vector<8x128xf32> to vector<8x64xf32>
    %44 = vector.extract_strided_slice %42 {offsets = [0, 64], sizes = [8, 64], strides = [1, 1]} : vector<8x128xf32> to vector<8x64xf32>
    %45 = vector.extract_strided_slice %32 {offsets = [0, 128], sizes = [8, 64], strides = [1, 1]} : vector<8x256xf32> to vector<8x64xf32>
    %46 = vector.broadcast %9 : vector<1x64xf32> to vector<8x64xf32>
    %47 = arith.addf %45, %46 : vector<8x64xf32>
    %48 = vector.extract_strided_slice %32 {offsets = [0, 192], sizes = [8, 64], strides = [1, 1]} : vector<8x256xf32> to vector<8x64xf32>
    %49 = vector.broadcast %10 : vector<1x64xf32> to vector<8x64xf32>
    %50 = arith.addf %48, %49 : vector<8x64xf32>
    %51 = arith.mulf %43, %50 : vector<8x64xf32>
    %52 = arith.addf %47, %51 : vector<8x64xf32>
    %53 = math.tanh %52 : vector<8x64xf32>
    %cst_24 = arith.constant 1.000000e+00 : f32
    %54 = vector.broadcast %cst_24 : f32 to vector<8x64xf32>
    %55 = arith.subf %54, %44 : vector<8x64xf32>
    %56 = arith.mulf %55, %53 : vector<8x64xf32>
    %57 = arith.mulf %44, %12 : vector<8x64xf32>
    %58 = arith.addf %56, %57 : vector<8x64xf32>
    %59 = arith.truncf %58 : vector<8x64xf32> to vector<8x64xbf16>
    %c96 = arith.constant 96 : index
    %c0_25 = arith.constant 0 : index
    %60 = vector.load %arg2[%c96, %c0_25] : memref<240x256xbf16, #tpu.memory_space<vmem>>, vector<64x32xbf16>
    %cst_26 = arith.constant dense<0.000000e+00> : vector<8x32xf32>
    %61 = tpu.matmul %59, %60, %cst_26 {dimension_numbers = #tpu.dot_dimension_numbers<[1], [0], [0], [1], [0, 0, 1, 1], [], []>} : vector<8x64xbf16>, vector<64x32xbf16>, vector<8x32xf32> -> vector<8x32xf32>
    %62 = arith.addf %61, %16 : vector<8x32xf32>
    %cst_27 = arith.constant 0.000000e+00 : f32
    %63 = vector.broadcast %cst_27 : f32 to vector<8x32xf32>
    %64 = arith.cmpf ogt, %62, %63 : vector<8x32xf32>
    %cst_28 = arith.constant 0.000000e+00 : f32
    %65 = vector.broadcast %cst_28 : f32 to vector<8x32xf32>
    %66 = arith.minimumf %62, %65 : vector<8x32xf32>
    %67 = math.exp %66 : vector<8x32xf32>
    %cst_29 = arith.constant 1.000000e+00 : f32
    %68 = vector.broadcast %cst_29 : f32 to vector<8x32xf32>
    %69 = arith.subf %67, %68 : vector<8x32xf32>
    %70 = arith.select %64, %62, %69 : vector<8x32xi1>, vector<8x32xf32>
    %71 = arith.truncf %70 : vector<8x32xf32> to vector<8x32xbf16>
    %c160_30 = arith.constant 160 : index
    %c32_31 = arith.constant 32 : index
    %72 = vector.load %arg2[%c160_30, %c32_31] : memref<240x256xbf16, #tpu.memory_space<vmem>>, vector<32x64xbf16>
    %cst_32 = arith.constant dense<0.000000e+00> : vector<8x64xf32>
    %73 = tpu.matmul %71, %72, %cst_32 {dimension_numbers = #tpu.dot_dimension_numbers<[1], [0], [0], [1], [0, 0, 1, 1], [], []>} : vector<8x32xbf16>, vector<32x64xbf16>, vector<8x64xf32> -> vector<8x64xf32>
    %c1_33 = arith.constant 1 : index
    %c0_34 = arith.constant 0 : index
    %74 = vector.load %arg3[%c1_33, %c0_34] : memref<8x256xf32, #tpu.memory_space<vmem>>, vector<1x64xf32>
    %75 = vector.broadcast %74 : vector<1x64xf32> to vector<8x64xf32>
    %76 = arith.addf %73, %75 : vector<8x64xf32>
    %77 = vector.extract_strided_slice %76 {offsets = [0, 0], sizes = [8, 32], strides = [1, 1]} : vector<8x64xf32> to vector<8x32xf32>
    %78 = vector.extract_strided_slice %76 {offsets = [0, 32], sizes = [8, 32], strides = [1, 1]} : vector<8x64xf32> to vector<8x32xf32>
    %cst_35 = arith.constant 0.000000e+00 : f32
    %79 = vector.broadcast %cst_35 : f32 to vector<8x32xf32>
    %80 = arith.maximumf %78, %79 : vector<8x32xf32>
    %81 = math.absf %78 : vector<8x32xf32>
    %cst_36 = arith.constant 0.000000e+00 : f32
    %82 = vector.broadcast %cst_36 : f32 to vector<8x32xf32>
    %83 = arith.subf %82, %81 : vector<8x32xf32>
    %84 = math.exp %83 : vector<8x32xf32>
    %cst_37 = arith.constant 1.000000e+00 : f32
    %85 = vector.broadcast %cst_37 : f32 to vector<8x32xf32>
    %86 = arith.addf %85, %84 : vector<8x32xf32>
    %87 = math.log %86 : vector<8x32xf32>
    %88 = arith.addf %80, %87 : vector<8x32xf32>
    %cst_38 = arith.constant 1.000000e-01 : f32
    %89 = vector.broadcast %cst_38 : f32 to vector<8x32xf32>
    %90 = arith.addf %88, %89 : vector<8x32xf32>
    %91 = arith.mulf %90, %17 : vector<8x32xf32>
    %92 = arith.addf %77, %91 : vector<8x32xf32>
    %93 = tpu.concatenate %77, %90, %92, %58, %13 in 1 : vector<8x32xf32>, vector<8x32xf32>, vector<8x32xf32>, vector<8x64xf32>, vector<8x96xf32> -> vector<8x256xf32>
    %c0_39 = arith.constant 0 : index
    %c0_40 = arith.constant 0 : index
    %94 = vector.load %arg4[%c0_39, %c0_40] : memref<32x256xf32, #tpu.memory_space<vmem>>, vector<8x256xf32>
    tpu.vector_store %arg4[%c0_39, %c0_40], %93 {strides = array<i32>} : memref<32x256xf32, #tpu.memory_space<vmem>>, vector<8x256xf32>,
    %95 = vector.extract_strided_slice %6 {offsets = [8, 0], sizes = [8, 64], strides = [1, 1]} : vector<32x64xf32> to vector<8x64xf32>
    %96 = vector.extract_strided_slice %95 {offsets = [0, 0], sizes = [8, 32], strides = [1, 1]} : vector<8x64xf32> to vector<8x32xf32>
    %97 = vector.extract_strided_slice %95 {offsets = [0, 32], sizes = [8, 32], strides = [1, 1]} : vector<8x64xf32> to vector<8x32xf32>
    %c8 = arith.constant 8 : index
    %c40_41 = arith.constant 40 : index
    %98 = vector.load %arg0[%c8, %c40_41] : memref<32x104xf32, #tpu.memory_space<vmem>>, vector<8x32xf32>
    %99 = arith.truncf %92 : vector<8x32xf32> to vector<8x32xbf16>
    %c160_42 = arith.constant 160 : index
    %c0_43 = arith.constant 0 : index
    %100 = vector.load %arg2[%c160_42, %c0_43] : memref<240x256xbf16, #tpu.memory_space<vmem>>, vector<32x32xbf16>
    %cst_44 = arith.constant dense<0.000000e+00> : vector<8x32xf32>
    %101 = tpu.matmul %99, %100, %cst_44 {dimension_numbers = #tpu.dot_dimension_numbers<[1], [0], [0], [1], [0, 0, 1, 1], [], []>} : vector<8x32xbf16>, vector<32x32xbf16>, vector<8x32xf32> -> vector<8x32xf32>
    %102 = arith.addf %101, %96 : vector<8x32xf32>
    %cst_45 = arith.constant 0.000000e+00 : f32
    %103 = vector.broadcast %cst_45 : f32 to vector<8x32xf32>
    %104 = arith.cmpf ogt, %102, %103 : vector<8x32xf32>
    %cst_46 = arith.constant 0.000000e+00 : f32
    %105 = vector.broadcast %cst_46 : f32 to vector<8x32xf32>
    %106 = arith.minimumf %102, %105 : vector<8x32xf32>
    %107 = math.exp %106 : vector<8x32xf32>
    %cst_47 = arith.constant 1.000000e+00 : f32
    %108 = vector.broadcast %cst_47 : f32 to vector<8x32xf32>
    %109 = arith.subf %107, %108 : vector<8x32xf32>
    %110 = arith.select %104, %102, %109 : vector<8x32xi1>, vector<8x32xf32>
    %111 = tpu.concatenate %110, %58 in 1 : vector<8x32xf32>, vector<8x64xf32> -> vector<8x96xf32>
    %112 = arith.truncf %111 : vector<8x96xf32> to vector<8x96xbf16>
    %cst_48 = arith.constant dense<0.000000e+00> : vector<8x256xf32>
    %113 = tpu.matmul %112, %7, %cst_48 {dimension_numbers = #tpu.dot_dimension_numbers<[1], [0], [0], [1], [0, 0, 1, 1], [], []>} : vector<8x96xbf16>, vector<96x256xbf16>, vector<8x256xf32> -> vector<8x256xf32>
    %114 = vector.extract_strided_slice %113 {offsets = [0, 0], sizes = [8, 128], strides = [1, 1]} : vector<8x256xf32> to vector<8x128xf32>
    %115 = vector.broadcast %8 : vector<1x128xf32> to vector<8x128xf32>
    %116 = arith.addf %114, %115 : vector<8x128xf32>
    %cst_49 = arith.constant 5.000000e-01 : f32
    %117 = vector.broadcast %cst_49 : f32 to vector<8x128xf32>
    %118 = arith.mulf %117, %116 : vector<8x128xf32>
    %119 = math.tanh %118 : vector<8x128xf32>
    %cst_50 = arith.constant 1.000000e+00 : f32
    %120 = vector.broadcast %cst_50 : f32 to vector<8x128xf32>
    %121 = arith.addf %119, %120 : vector<8x128xf32>
    %cst_51 = arith.constant 5.000000e-01 : f32
    %122 = vector.broadcast %cst_51 : f32 to vector<8x128xf32>
    %123 = arith.mulf %122, %121 : vector<8x128xf32>
    %124 = vector.extract_strided_slice %123 {offsets = [0, 0], sizes = [8, 64], strides = [1, 1]} : vector<8x128xf32> to vector<8x64xf32>
    %125 = vector.extract_strided_slice %123 {offsets = [0, 64], sizes = [8, 64], strides = [1, 1]} : vector<8x128xf32> to vector<8x64xf32>
    %126 = vector.extract_strided_slice %113 {offsets = [0, 128], sizes = [8, 64], strides = [1, 1]} : vector<8x256xf32> to vector<8x64xf32>
    %127 = vector.broadcast %9 : vector<1x64xf32> to vector<8x64xf32>
    %128 = arith.addf %126, %127 : vector<8x64xf32>
    %129 = vector.extract_strided_slice %113 {offsets = [0, 192], sizes = [8, 64], strides = [1, 1]} : vector<8x256xf32> to vector<8x64xf32>
    %130 = vector.broadcast %10 : vector<1x64xf32> to vector<8x64xf32>
    %131 = arith.addf %129, %130 : vector<8x64xf32>
    %132 = arith.mulf %124, %131 : vector<8x64xf32>
    %133 = arith.addf %128, %132 : vector<8x64xf32>
    %134 = math.tanh %133 : vector<8x64xf32>
    %cst_52 = arith.constant 1.000000e+00 : f32
    %135 = vector.broadcast %cst_52 : f32 to vector<8x64xf32>
    %136 = arith.subf %135, %125 : vector<8x64xf32>
    %137 = arith.mulf %136, %134 : vector<8x64xf32>
    %138 = arith.mulf %125, %58 : vector<8x64xf32>
    %139 = arith.addf %137, %138 : vector<8x64xf32>
    %140 = arith.truncf %139 : vector<8x64xf32> to vector<8x64xbf16>
    %c96_53 = arith.constant 96 : index
    %c0_54 = arith.constant 0 : index
    %141 = vector.load %arg2[%c96_53, %c0_54] : memref<240x256xbf16, #tpu.memory_space<vmem>>, vector<64x32xbf16>
    %cst_55 = arith.constant dense<0.000000e+00> : vector<8x32xf32>
    %142 = tpu.matmul %140, %141, %cst_55 {dimension_numbers = #tpu.dot_dimension_numbers<[1], [0], [0], [1], [0, 0, 1, 1], [], []>} : vector<8x64xbf16>, vector<64x32xbf16>, vector<8x32xf32> -> vector<8x32xf32>
    %143 = arith.addf %142, %97 : vector<8x32xf32>
    %cst_56 = arith.constant 0.000000e+00 : f32
    %144 = vector.broadcast %cst_56 : f32 to vector<8x32xf32>
    %145 = arith.cmpf ogt, %143, %144 : vector<8x32xf32>
    %cst_57 = arith.constant 0.000000e+00 : f32
    %146 = vector.broadcast %cst_57 : f32 to vector<8x32xf32>
    %147 = arith.minimumf %143, %146 : vector<8x32xf32>
    %148 = math.exp %147 : vector<8x32xf32>
    %cst_58 = arith.constant 1.000000e+00 : f32
    %149 = vector.broadcast %cst_58 : f32 to vector<8x32xf32>
    %150 = arith.subf %148, %149 : vector<8x32xf32>
    %151 = arith.select %145, %143, %150 : vector<8x32xi1>, vector<8x32xf32>
    %152 = arith.truncf %151 : vector<8x32xf32> to vector<8x32xbf16>
    %c160_59 = arith.constant 160 : index
    %c32_60 = arith.constant 32 : index
    %153 = vector.load %arg2[%c160_59, %c32_60] : memref<240x256xbf16, #tpu.memory_space<vmem>>, vector<32x64xbf16>
    %cst_61 = arith.constant dense<0.000000e+00> : vector<8x64xf32>
    %154 = tpu.matmul %152, %153, %cst_61 {dimension_numbers = #tpu.dot_dimension_numbers<[1], [0], [0], [1], [0, 0, 1, 1], [], []>} : vector<8x32xbf16>, vector<32x64xbf16>, vector<8x64xf32> -> vector<8x64xf32>
    %c1_62 = arith.constant 1 : index
    %c0_63 = arith.constant 0 : index
    %155 = vector.load %arg3[%c1_62, %c0_63] : memref<8x256xf32, #tpu.memory_space<vmem>>, vector<1x64xf32>
    %156 = vector.broadcast %155 : vector<1x64xf32> to vector<8x64xf32>
    %157 = arith.addf %154, %156 : vector<8x64xf32>
    %158 = vector.extract_strided_slice %157 {offsets = [0, 0], sizes = [8, 32], strides = [1, 1]} : vector<8x64xf32> to vector<8x32xf32>
    %159 = vector.extract_strided_slice %157 {offsets = [0, 32], sizes = [8, 32], strides = [1, 1]} : vector<8x64xf32> to vector<8x32xf32>
    %cst_64 = arith.constant 0.000000e+00 : f32
    %160 = vector.broadcast %cst_64 : f32 to vector<8x32xf32>
    %161 = arith.maximumf %159, %160 : vector<8x32xf32>
    %162 = math.absf %159 : vector<8x32xf32>
    %cst_65 = arith.constant 0.000000e+00 : f32
    %163 = vector.broadcast %cst_65 : f32 to vector<8x32xf32>
    %164 = arith.subf %163, %162 : vector<8x32xf32>
    %165 = math.exp %164 : vector<8x32xf32>
    %cst_66 = arith.constant 1.000000e+00 : f32
    %166 = vector.broadcast %cst_66 : f32 to vector<8x32xf32>
    %167 = arith.addf %166, %165 : vector<8x32xf32>
    %168 = math.log %167 : vector<8x32xf32>
    %169 = arith.addf %161, %168 : vector<8x32xf32>
    %cst_67 = arith.constant 1.000000e-01 : f32
    %170 = vector.broadcast %cst_67 : f32 to vector<8x32xf32>
    %171 = arith.addf %169, %170 : vector<8x32xf32>
    %172 = arith.mulf %171, %98 : vector<8x32xf32>
    %173 = arith.addf %158, %172 : vector<8x32xf32>
    %174 = tpu.concatenate %158, %171, %173, %139, %13 in 1 : vector<8x32xf32>, vector<8x32xf32>, vector<8x32xf32>, vector<8x64xf32>, vector<8x96xf32> -> vector<8x256xf32>
    %c8_68 = arith.constant 8 : index
    %c0_69 = arith.constant 0 : index
    %175 = vector.load %arg4[%c8_68, %c0_69] : memref<32x256xf32, #tpu.memory_space<vmem>>, vector<8x256xf32>
    tpu.vector_store %arg4[%c8_68, %c0_69], %174 {strides = array<i32>} : memref<32x256xf32, #tpu.memory_space<vmem>>, vector<8x256xf32>,
    %176 = vector.extract_strided_slice %6 {offsets = [16, 0], sizes = [8, 64], strides = [1, 1]} : vector<32x64xf32> to vector<8x64xf32>
    %177 = vector.extract_strided_slice %176 {offsets = [0, 0], sizes = [8, 32], strides = [1, 1]} : vector<8x64xf32> to vector<8x32xf32>
    %178 = vector.extract_strided_slice %176 {offsets = [0, 32], sizes = [8, 32], strides = [1, 1]} : vector<8x64xf32> to vector<8x32xf32>
    %c16 = arith.constant 16 : index
    %c40_70 = arith.constant 40 : index
    %179 = vector.load %arg0[%c16, %c40_70] : memref<32x104xf32, #tpu.memory_space<vmem>>, vector<8x32xf32>
    %180 = arith.truncf %173 : vector<8x32xf32> to vector<8x32xbf16>
    %c160_71 = arith.constant 160 : index
    %c0_72 = arith.constant 0 : index
    %181 = vector.load %arg2[%c160_71, %c0_72] : memref<240x256xbf16, #tpu.memory_space<vmem>>, vector<32x32xbf16>
    %cst_73 = arith.constant dense<0.000000e+00> : vector<8x32xf32>
    %182 = tpu.matmul %180, %181, %cst_73 {dimension_numbers = #tpu.dot_dimension_numbers<[1], [0], [0], [1], [0, 0, 1, 1], [], []>} : vector<8x32xbf16>, vector<32x32xbf16>, vector<8x32xf32> -> vector<8x32xf32>
    %183 = arith.addf %182, %177 : vector<8x32xf32>
    %cst_74 = arith.constant 0.000000e+00 : f32
    %184 = vector.broadcast %cst_74 : f32 to vector<8x32xf32>
    %185 = arith.cmpf ogt, %183, %184 : vector<8x32xf32>
    %cst_75 = arith.constant 0.000000e+00 : f32
    %186 = vector.broadcast %cst_75 : f32 to vector<8x32xf32>
    %187 = arith.minimumf %183, %186 : vector<8x32xf32>
    %188 = math.exp %187 : vector<8x32xf32>
    %cst_76 = arith.constant 1.000000e+00 : f32
    %189 = vector.broadcast %cst_76 : f32 to vector<8x32xf32>
    %190 = arith.subf %188, %189 : vector<8x32xf32>
    %191 = arith.select %185, %183, %190 : vector<8x32xi1>, vector<8x32xf32>
    %192 = tpu.concatenate %191, %139 in 1 : vector<8x32xf32>, vector<8x64xf32> -> vector<8x96xf32>
    %193 = arith.truncf %192 : vector<8x96xf32> to vector<8x96xbf16>
    %cst_77 = arith.constant dense<0.000000e+00> : vector<8x256xf32>
    %194 = tpu.matmul %193, %7, %cst_77 {dimension_numbers = #tpu.dot_dimension_numbers<[1], [0], [0], [1], [0, 0, 1, 1], [], []>} : vector<8x96xbf16>, vector<96x256xbf16>, vector<8x256xf32> -> vector<8x256xf32>
    %195 = vector.extract_strided_slice %194 {offsets = [0, 0], sizes = [8, 128], strides = [1, 1]} : vector<8x256xf32> to vector<8x128xf32>
    %196 = vector.broadcast %8 : vector<1x128xf32> to vector<8x128xf32>
    %197 = arith.addf %195, %196 : vector<8x128xf32>
    %cst_78 = arith.constant 5.000000e-01 : f32
    %198 = vector.broadcast %cst_78 : f32 to vector<8x128xf32>
    %199 = arith.mulf %198, %197 : vector<8x128xf32>
    %200 = math.tanh %199 : vector<8x128xf32>
    %cst_79 = arith.constant 1.000000e+00 : f32
    %201 = vector.broadcast %cst_79 : f32 to vector<8x128xf32>
    %202 = arith.addf %200, %201 : vector<8x128xf32>
    %cst_80 = arith.constant 5.000000e-01 : f32
    %203 = vector.broadcast %cst_80 : f32 to vector<8x128xf32>
    %204 = arith.mulf %203, %202 : vector<8x128xf32>
    %205 = vector.extract_strided_slice %204 {offsets = [0, 0], sizes = [8, 64], strides = [1, 1]} : vector<8x128xf32> to vector<8x64xf32>
    %206 = vector.extract_strided_slice %204 {offsets = [0, 64], sizes = [8, 64], strides = [1, 1]} : vector<8x128xf32> to vector<8x64xf32>
    %207 = vector.extract_strided_slice %194 {offsets = [0, 128], sizes = [8, 64], strides = [1, 1]} : vector<8x256xf32> to vector<8x64xf32>
    %208 = vector.broadcast %9 : vector<1x64xf32> to vector<8x64xf32>
    %209 = arith.addf %207, %208 : vector<8x64xf32>
    %210 = vector.extract_strided_slice %194 {offsets = [0, 192], sizes = [8, 64], strides = [1, 1]} : vector<8x256xf32> to vector<8x64xf32>
    %211 = vector.broadcast %10 : vector<1x64xf32> to vector<8x64xf32>
    %212 = arith.addf %210, %211 : vector<8x64xf32>
    %213 = arith.mulf %205, %212 : vector<8x64xf32>
    %214 = arith.addf %209, %213 : vector<8x64xf32>
    %215 = math.tanh %214 : vector<8x64xf32>
    %cst_81 = arith.constant 1.000000e+00 : f32
    %216 = vector.broadcast %cst_81 : f32 to vector<8x64xf32>
    %217 = arith.subf %216, %206 : vector<8x64xf32>
    %218 = arith.mulf %217, %215 : vector<8x64xf32>
    %219 = arith.mulf %206, %139 : vector<8x64xf32>
    %220 = arith.addf %218, %219 : vector<8x64xf32>
    %221 = arith.truncf %220 : vector<8x64xf32> to vector<8x64xbf16>
    %c96_82 = arith.constant 96 : index
    %c0_83 = arith.constant 0 : index
    %222 = vector.load %arg2[%c96_82, %c0_83] : memref<240x256xbf16, #tpu.memory_space<vmem>>, vector<64x32xbf16>
    %cst_84 = arith.constant dense<0.000000e+00> : vector<8x32xf32>
    %223 = tpu.matmul %221, %222, %cst_84 {dimension_numbers = #tpu.dot_dimension_numbers<[1], [0], [0], [1], [0, 0, 1, 1], [], []>} : vector<8x64xbf16>, vector<64x32xbf16>, vector<8x32xf32> -> vector<8x32xf32>
    %224 = arith.addf %223, %178 : vector<8x32xf32>
    %cst_85 = arith.constant 0.000000e+00 : f32
    %225 = vector.broadcast %cst_85 : f32 to vector<8x32xf32>
    %226 = arith.cmpf ogt, %224, %225 : vector<8x32xf32>
    %cst_86 = arith.constant 0.000000e+00 : f32
    %227 = vector.broadcast %cst_86 : f32 to vector<8x32xf32>
    %228 = arith.minimumf %224, %227 : vector<8x32xf32>
    %229 = math.exp %228 : vector<8x32xf32>
    %cst_87 = arith.constant 1.000000e+00 : f32
    %230 = vector.broadcast %cst_87 : f32 to vector<8x32xf32>
    %231 = arith.subf %229, %230 : vector<8x32xf32>
    %232 = arith.select %226, %224, %231 : vector<8x32xi1>, vector<8x32xf32>
    %233 = arith.truncf %232 : vector<8x32xf32> to vector<8x32xbf16>
    %c160_88 = arith.constant 160 : index
    %c32_89 = arith.constant 32 : index
    %234 = vector.load %arg2[%c160_88, %c32_89] : memref<240x256xbf16, #tpu.memory_space<vmem>>, vector<32x64xbf16>
    %cst_90 = arith.constant dense<0.000000e+00> : vector<8x64xf32>
    %235 = tpu.matmul %233, %234, %cst_90 {dimension_numbers = #tpu.dot_dimension_numbers<[1], [0], [0], [1], [0, 0, 1, 1], [], []>} : vector<8x32xbf16>, vector<32x64xbf16>, vector<8x64xf32> -> vector<8x64xf32>
    %c1_91 = arith.constant 1 : index
    %c0_92 = arith.constant 0 : index
    %236 = vector.load %arg3[%c1_91, %c0_92] : memref<8x256xf32, #tpu.memory_space<vmem>>, vector<1x64xf32>
    %237 = vector.broadcast %236 : vector<1x64xf32> to vector<8x64xf32>
    %238 = arith.addf %235, %237 : vector<8x64xf32>
    %239 = vector.extract_strided_slice %238 {offsets = [0, 0], sizes = [8, 32], strides = [1, 1]} : vector<8x64xf32> to vector<8x32xf32>
    %240 = vector.extract_strided_slice %238 {offsets = [0, 32], sizes = [8, 32], strides = [1, 1]} : vector<8x64xf32> to vector<8x32xf32>
    %cst_93 = arith.constant 0.000000e+00 : f32
    %241 = vector.broadcast %cst_93 : f32 to vector<8x32xf32>
    %242 = arith.maximumf %240, %241 : vector<8x32xf32>
    %243 = math.absf %240 : vector<8x32xf32>
    %cst_94 = arith.constant 0.000000e+00 : f32
    %244 = vector.broadcast %cst_94 : f32 to vector<8x32xf32>
    %245 = arith.subf %244, %243 : vector<8x32xf32>
    %246 = math.exp %245 : vector<8x32xf32>
    %cst_95 = arith.constant 1.000000e+00 : f32
    %247 = vector.broadcast %cst_95 : f32 to vector<8x32xf32>
    %248 = arith.addf %247, %246 : vector<8x32xf32>
    %249 = math.log %248 : vector<8x32xf32>
    %250 = arith.addf %242, %249 : vector<8x32xf32>
    %cst_96 = arith.constant 1.000000e-01 : f32
    %251 = vector.broadcast %cst_96 : f32 to vector<8x32xf32>
    %252 = arith.addf %250, %251 : vector<8x32xf32>
    %253 = arith.mulf %252, %179 : vector<8x32xf32>
    %254 = arith.addf %239, %253 : vector<8x32xf32>
    %255 = tpu.concatenate %239, %252, %254, %220, %13 in 1 : vector<8x32xf32>, vector<8x32xf32>, vector<8x32xf32>, vector<8x64xf32>, vector<8x96xf32> -> vector<8x256xf32>
    %c16_97 = arith.constant 16 : index
    %c0_98 = arith.constant 0 : index
    %256 = vector.load %arg4[%c16_97, %c0_98] : memref<32x256xf32, #tpu.memory_space<vmem>>, vector<8x256xf32>
    tpu.vector_store %arg4[%c16_97, %c0_98], %255 {strides = array<i32>} : memref<32x256xf32, #tpu.memory_space<vmem>>, vector<8x256xf32>,
    %257 = vector.extract_strided_slice %6 {offsets = [24, 0], sizes = [8, 64], strides = [1, 1]} : vector<32x64xf32> to vector<8x64xf32>
    %258 = vector.extract_strided_slice %257 {offsets = [0, 0], sizes = [8, 32], strides = [1, 1]} : vector<8x64xf32> to vector<8x32xf32>
    %259 = vector.extract_strided_slice %257 {offsets = [0, 32], sizes = [8, 32], strides = [1, 1]} : vector<8x64xf32> to vector<8x32xf32>
    %c24 = arith.constant 24 : index
    %c40_99 = arith.constant 40 : index
    %260 = vector.load %arg0[%c24, %c40_99] : memref<32x104xf32, #tpu.memory_space<vmem>>, vector<8x32xf32>
    %261 = arith.truncf %254 : vector<8x32xf32> to vector<8x32xbf16>
    %c160_100 = arith.constant 160 : index
    %c0_101 = arith.constant 0 : index
    %262 = vector.load %arg2[%c160_100, %c0_101] : memref<240x256xbf16, #tpu.memory_space<vmem>>, vector<32x32xbf16>
    %cst_102 = arith.constant dense<0.000000e+00> : vector<8x32xf32>
    %263 = tpu.matmul %261, %262, %cst_102 {dimension_numbers = #tpu.dot_dimension_numbers<[1], [0], [0], [1], [0, 0, 1, 1], [], []>} : vector<8x32xbf16>, vector<32x32xbf16>, vector<8x32xf32> -> vector<8x32xf32>
    %264 = arith.addf %263, %258 : vector<8x32xf32>
    %cst_103 = arith.constant 0.000000e+00 : f32
    %265 = vector.broadcast %cst_103 : f32 to vector<8x32xf32>
    %266 = arith.cmpf ogt, %264, %265 : vector<8x32xf32>
    %cst_104 = arith.constant 0.000000e+00 : f32
    %267 = vector.broadcast %cst_104 : f32 to vector<8x32xf32>
    %268 = arith.minimumf %264, %267 : vector<8x32xf32>
    %269 = math.exp %268 : vector<8x32xf32>
    %cst_105 = arith.constant 1.000000e+00 : f32
    %270 = vector.broadcast %cst_105 : f32 to vector<8x32xf32>
    %271 = arith.subf %269, %270 : vector<8x32xf32>
    %272 = arith.select %266, %264, %271 : vector<8x32xi1>, vector<8x32xf32>
    %273 = tpu.concatenate %272, %220 in 1 : vector<8x32xf32>, vector<8x64xf32> -> vector<8x96xf32>
    %274 = arith.truncf %273 : vector<8x96xf32> to vector<8x96xbf16>
    %cst_106 = arith.constant dense<0.000000e+00> : vector<8x256xf32>
    %275 = tpu.matmul %274, %7, %cst_106 {dimension_numbers = #tpu.dot_dimension_numbers<[1], [0], [0], [1], [0, 0, 1, 1], [], []>} : vector<8x96xbf16>, vector<96x256xbf16>, vector<8x256xf32> -> vector<8x256xf32>
    %276 = vector.extract_strided_slice %275 {offsets = [0, 0], sizes = [8, 128], strides = [1, 1]} : vector<8x256xf32> to vector<8x128xf32>
    %277 = vector.broadcast %8 : vector<1x128xf32> to vector<8x128xf32>
    %278 = arith.addf %276, %277 : vector<8x128xf32>
    %cst_107 = arith.constant 5.000000e-01 : f32
    %279 = vector.broadcast %cst_107 : f32 to vector<8x128xf32>
    %280 = arith.mulf %279, %278 : vector<8x128xf32>
    %281 = math.tanh %280 : vector<8x128xf32>
    %cst_108 = arith.constant 1.000000e+00 : f32
    %282 = vector.broadcast %cst_108 : f32 to vector<8x128xf32>
    %283 = arith.addf %281, %282 : vector<8x128xf32>
    %cst_109 = arith.constant 5.000000e-01 : f32
    %284 = vector.broadcast %cst_109 : f32 to vector<8x128xf32>
    %285 = arith.mulf %284, %283 : vector<8x128xf32>
    %286 = vector.extract_strided_slice %285 {offsets = [0, 0], sizes = [8, 64], strides = [1, 1]} : vector<8x128xf32> to vector<8x64xf32>
    %287 = vector.extract_strided_slice %285 {offsets = [0, 64], sizes = [8, 64], strides = [1, 1]} : vector<8x128xf32> to vector<8x64xf32>
    %288 = vector.extract_strided_slice %275 {offsets = [0, 128], sizes = [8, 64], strides = [1, 1]} : vector<8x256xf32> to vector<8x64xf32>
    %289 = vector.broadcast %9 : vector<1x64xf32> to vector<8x64xf32>
    %290 = arith.addf %288, %289 : vector<8x64xf32>
    %291 = vector.extract_strided_slice %275 {offsets = [0, 192], sizes = [8, 64], strides = [1, 1]} : vector<8x256xf32> to vector<8x64xf32>
    %292 = vector.broadcast %10 : vector<1x64xf32> to vector<8x64xf32>
    %293 = arith.addf %291, %292 : vector<8x64xf32>
    %294 = arith.mulf %286, %293 : vector<8x64xf32>
    %295 = arith.addf %290, %294 : vector<8x64xf32>
    %296 = math.tanh %295 : vector<8x64xf32>
    %cst_110 = arith.constant 1.000000e+00 : f32
    %297 = vector.broadcast %cst_110 : f32 to vector<8x64xf32>
    %298 = arith.subf %297, %287 : vector<8x64xf32>
    %299 = arith.mulf %298, %296 : vector<8x64xf32>
    %300 = arith.mulf %287, %220 : vector<8x64xf32>
    %301 = arith.addf %299, %300 : vector<8x64xf32>
    %302 = arith.truncf %301 : vector<8x64xf32> to vector<8x64xbf16>
    %c96_111 = arith.constant 96 : index
    %c0_112 = arith.constant 0 : index
    %303 = vector.load %arg2[%c96_111, %c0_112] : memref<240x256xbf16, #tpu.memory_space<vmem>>, vector<64x32xbf16>
    %cst_113 = arith.constant dense<0.000000e+00> : vector<8x32xf32>
    %304 = tpu.matmul %302, %303, %cst_113 {dimension_numbers = #tpu.dot_dimension_numbers<[1], [0], [0], [1], [0, 0, 1, 1], [], []>} : vector<8x64xbf16>, vector<64x32xbf16>, vector<8x32xf32> -> vector<8x32xf32>
    %305 = arith.addf %304, %259 : vector<8x32xf32>
    %cst_114 = arith.constant 0.000000e+00 : f32
    %306 = vector.broadcast %cst_114 : f32 to vector<8x32xf32>
    %307 = arith.cmpf ogt, %305, %306 : vector<8x32xf32>
    %cst_115 = arith.constant 0.000000e+00 : f32
    %308 = vector.broadcast %cst_115 : f32 to vector<8x32xf32>
    %309 = arith.minimumf %305, %308 : vector<8x32xf32>
    %310 = math.exp %309 : vector<8x32xf32>
    %cst_116 = arith.constant 1.000000e+00 : f32
    %311 = vector.broadcast %cst_116 : f32 to vector<8x32xf32>
    %312 = arith.subf %310, %311 : vector<8x32xf32>
    %313 = arith.select %307, %305, %312 : vector<8x32xi1>, vector<8x32xf32>
    %314 = arith.truncf %313 : vector<8x32xf32> to vector<8x32xbf16>
    %c160_117 = arith.constant 160 : index
    %c32_118 = arith.constant 32 : index
    %315 = vector.load %arg2[%c160_117, %c32_118] : memref<240x256xbf16, #tpu.memory_space<vmem>>, vector<32x64xbf16>
    %cst_119 = arith.constant dense<0.000000e+00> : vector<8x64xf32>
    %316 = tpu.matmul %314, %315, %cst_119 {dimension_numbers = #tpu.dot_dimension_numbers<[1], [0], [0], [1], [0, 0, 1, 1], [], []>} : vector<8x32xbf16>, vector<32x64xbf16>, vector<8x64xf32> -> vector<8x64xf32>
    %c1_120 = arith.constant 1 : index
    %c0_121 = arith.constant 0 : index
    %317 = vector.load %arg3[%c1_120, %c0_121] : memref<8x256xf32, #tpu.memory_space<vmem>>, vector<1x64xf32>
    %318 = vector.broadcast %317 : vector<1x64xf32> to vector<8x64xf32>
    %319 = arith.addf %316, %318 : vector<8x64xf32>
    %320 = vector.extract_strided_slice %319 {offsets = [0, 0], sizes = [8, 32], strides = [1, 1]} : vector<8x64xf32> to vector<8x32xf32>
    %321 = vector.extract_strided_slice %319 {offsets = [0, 32], sizes = [8, 32], strides = [1, 1]} : vector<8x64xf32> to vector<8x32xf32>
    %cst_122 = arith.constant 0.000000e+00 : f32
    %322 = vector.broadcast %cst_122 : f32 to vector<8x32xf32>
    %323 = arith.maximumf %321, %322 : vector<8x32xf32>
    %324 = math.absf %321 : vector<8x32xf32>
    %cst_123 = arith.constant 0.000000e+00 : f32
    %325 = vector.broadcast %cst_123 : f32 to vector<8x32xf32>
    %326 = arith.subf %325, %324 : vector<8x32xf32>
    %327 = math.exp %326 : vector<8x32xf32>
    %cst_124 = arith.constant 1.000000e+00 : f32
    %328 = vector.broadcast %cst_124 : f32 to vector<8x32xf32>
    %329 = arith.addf %328, %327 : vector<8x32xf32>
    %330 = math.log %329 : vector<8x32xf32>
    %331 = arith.addf %323, %330 : vector<8x32xf32>
    %cst_125 = arith.constant 1.000000e-01 : f32
    %332 = vector.broadcast %cst_125 : f32 to vector<8x32xf32>
    %333 = arith.addf %331, %332 : vector<8x32xf32>
    %334 = arith.mulf %333, %260 : vector<8x32xf32>
    %335 = arith.addf %320, %334 : vector<8x32xf32>
    %336 = tpu.concatenate %320, %333, %335, %301, %13 in 1 : vector<8x32xf32>, vector<8x32xf32>, vector<8x32xf32>, vector<8x64xf32>, vector<8x96xf32> -> vector<8x256xf32>
    %c24_126 = arith.constant 24 : index
    %c0_127 = arith.constant 0 : index
    %337 = vector.load %arg4[%c24_126, %c0_127] : memref<32x256xf32, #tpu.memory_space<vmem>>, vector<8x256xf32>
    tpu.vector_store %arg4[%c24_126, %c0_127], %336 {strides = array<i32>} : memref<32x256xf32, #tpu.memory_space<vmem>>, vector<8x256xf32>,
    %338 = tpu.concatenate %58, %139, %220, %301 in 0 : vector<8x64xf32>, vector<8x64xf32>, vector<8x64xf32>, vector<8x64xf32> -> vector<32x64xf32>
    %c0_128 = arith.constant 0 : index
    %c72 = arith.constant 72 : index
    %339 = vector.load %arg0[%c0_128, %c72] : memref<32x104xf32, #tpu.memory_space<vmem>>, vector<32x32xf32>
    %c96_129 = arith.constant 96 : index
    %c32_130 = arith.constant 32 : index
    %340 = vector.load %arg2[%c96_129, %c32_130] : memref<240x256xbf16, #tpu.memory_space<vmem>>, vector<64x32xbf16>
    %c160_131 = arith.constant 160 : index
    %c96_132 = arith.constant 96 : index
    %341 = vector.load %arg2[%c160_131, %c96_132] : memref<240x256xbf16, #tpu.memory_space<vmem>>, vector<32x64xbf16>
    %c1_133 = arith.constant 1 : index
    %c64 = arith.constant 64 : index
    %342 = vector.load %arg3[%c1_133, %c64] : memref<8x256xf32, #tpu.memory_space<vmem>>, vector<1x32xf32>
    %c1_134 = arith.constant 1 : index
    %c96_135 = arith.constant 96 : index
    %343 = vector.load %arg3[%c1_134, %c96_135] : memref<8x256xf32, #tpu.memory_space<vmem>>, vector<1x64xf32>
    %344 = arith.truncf %338 : vector<32x64xf32> to vector<32x64xbf16>
    %cst_136 = arith.constant dense<0.000000e+00> : vector<32x32xf32>
    %345 = tpu.matmul %344, %340, %cst_136 {dimension_numbers = #tpu.dot_dimension_numbers<[1], [0], [0], [1], [0, 0, 1, 1], [], []>} : vector<32x64xbf16>, vector<64x32xbf16>, vector<32x32xf32> -> vector<32x32xf32>
    %346 = vector.broadcast %342 : vector<1x32xf32> to vector<32x32xf32>
    %347 = arith.addf %345, %346 : vector<32x32xf32>
    %cst_137 = arith.constant 0.000000e+00 : f32
    %348 = vector.broadcast %cst_137 : f32 to vector<32x32xf32>
    %349 = arith.cmpf ogt, %347, %348 : vector<32x32xf32>
    %cst_138 = arith.constant 0.000000e+00 : f32
    %350 = vector.broadcast %cst_138 : f32 to vector<32x32xf32>
    %351 = arith.minimumf %347, %350 : vector<32x32xf32>
    %352 = math.exp %351 : vector<32x32xf32>
    %cst_139 = arith.constant 1.000000e+00 : f32
    %353 = vector.broadcast %cst_139 : f32 to vector<32x32xf32>
    %354 = arith.subf %352, %353 : vector<32x32xf32>
    %355 = arith.select %349, %347, %354 : vector<32x32xi1>, vector<32x32xf32>
    %356 = arith.truncf %355 : vector<32x32xf32> to vector<32x32xbf16>
    %cst_140 = arith.constant dense<0.000000e+00> : vector<32x64xf32>
    %357 = tpu.matmul %356, %341, %cst_140 {dimension_numbers = #tpu.dot_dimension_numbers<[1], [0], [0], [1], [0, 0, 1, 1], [], []>} : vector<32x32xbf16>, vector<32x64xbf16>, vector<32x64xf32> -> vector<32x64xf32>
    %358 = vector.broadcast %343 : vector<1x64xf32> to vector<32x64xf32>
    %359 = arith.addf %357, %358 : vector<32x64xf32>
    %360 = vector.extract_strided_slice %359 {offsets = [0, 0], sizes = [32, 32], strides = [1, 1]} : vector<32x64xf32> to vector<32x32xf32>
    %361 = vector.extract_strided_slice %359 {offsets = [0, 32], sizes = [32, 32], strides = [1, 1]} : vector<32x64xf32> to vector<32x32xf32>
    %cst_141 = arith.constant 0.000000e+00 : f32
    %362 = vector.broadcast %cst_141 : f32 to vector<32x32xf32>
    %363 = arith.maximumf %361, %362 : vector<32x32xf32>
    %364 = math.absf %361 : vector<32x32xf32>
    %cst_142 = arith.constant 0.000000e+00 : f32
    %365 = vector.broadcast %cst_142 : f32 to vector<32x32xf32>
    %366 = arith.subf %365, %364 : vector<32x32xf32>
    %367 = math.exp %366 : vector<32x32xf32>
    %cst_143 = arith.constant 1.000000e+00 : f32
    %368 = vector.broadcast %cst_143 : f32 to vector<32x32xf32>
    %369 = arith.addf %368, %367 : vector<32x32xf32>
    %370 = math.log %369 : vector<32x32xf32>
    %371 = arith.addf %363, %370 : vector<32x32xf32>
    %cst_144 = arith.constant 1.000000e-01 : f32
    %372 = vector.broadcast %cst_144 : f32 to vector<32x32xf32>
    %373 = arith.addf %371, %372 : vector<32x32xf32>
    %374 = arith.mulf %373, %339 : vector<32x32xf32>
    %375 = arith.addf %360, %374 : vector<32x32xf32>
    %376 = tpu.concatenate %360, %373, %375 in 1 : vector<32x32xf32>, vector<32x32xf32>, vector<32x32xf32> -> vector<32x96xf32>
    %c0_145 = arith.constant 0 : index
    %c160_146 = arith.constant 160 : index
    %377 = vector.load %arg4[%c0_145, %c160_146] : memref<32x256xf32, #tpu.memory_space<vmem>>, vector<32x96xf32>
    tpu.vector_store %arg4[%c0_145, %c160_146], %376 {strides = array<i32>} : memref<32x256xf32, #tpu.memory_space<vmem>>, vector<32x96xf32>,
    return
  }
}

</mosaic_0001>

<llo_original>
// kernel: representation_iterator.1
$region0: #{representation_iterator.1}
  #allocation0 [shape = 'u32[]', space=smem, size = 0x4, offset = 0x4, fixed_abs, tag = 'smem constant byte address 0x4 - core index']
  #allocation1 [shape = 'u32[144,128]{1,0:T(1,128)}', space=vmem, size = 0x12000, scoped, tag = 'internal scratch']
  %s0 = inlined_call_operand.vmem [shape: f32[32,104], index: 0, kind: input, shape index: {}]
  %s1 = inlined_call_operand.vmem [shape: f32[8,96], index: 1, kind: input, shape index: {}]
  %s2 = inlined_call_operand.vmem [shape: bf16[240,256], index: 2, kind: input, shape index: {}]
  %s3 = inlined_call_operand.vmem [shape: f32[8,256], index: 3, kind: input, shape index: {}]
  %s4 = inlined_call_operand.vmem [shape: f32[32,256], index: 4, kind: output, shape index: {}]
  %s5 = sld [smem:[#allocation0]]
  $region26: #{representation_iterator.1} parent=0
    _
  %s7 = ssub.s32 1, %s5
  %s8 = scalar_select 0, %s7, %s5
  // Predicated region
  $region2: #{representation_iterator.1} parent=0 // pred_check
    _
  $region3: #{representation_iterator.1} parent=0 // pred_check_branch
    %10 = sbr.rel (0) target = $region5
  $region4: #{representation_iterator.1} parent=0 // pred_region
    _
  $region5: #{representation_iterator.1} parent=0 // pred_fallthru
    _
  // Predicated region
  $region6: #{representation_iterator.1} parent=0 // pred_check
    _
  $region7: #{representation_iterator.1} parent=0 // pred_check_branch
    %12 = sbr.rel (0) target = $region9
  $region8: #{representation_iterator.1} parent=0 // pred_region
    _
  $region9: #{representation_iterator.1} parent=0 // pred_fallthru
    _
  // Predicated region
  $region10: #{representation_iterator.1} parent=0 // pred_check
    _
  $region11: #{representation_iterator.1} parent=0 // pred_check_branch
    %14 = sbr.rel (0) target = $region13
  $region12: #{representation_iterator.1} parent=0 // pred_region
    _
  $region13: #{representation_iterator.1} parent=0 // pred_fallthru
    _
  // Predicated region
  $region14: #{representation_iterator.1} parent=0 // pred_check
    _
  $region15: #{representation_iterator.1} parent=0 // pred_check_branch
    %16 = sbr.rel (0) target = $region17
  $region16: #{representation_iterator.1} parent=0 // pred_region
    _
  $region17: #{representation_iterator.1} parent=0 // pred_fallthru
    _
  %v18 = vld [vmem:[%s0] sm:$0xff]
  %v19 = vld [vmem:[%s0 + $0x8] sm:$0xff]
  %v20 = vld [vmem:[%s0 + $0x10] sm:$0xff]
  %v21 = vld [vmem:[%s0 + $0x18] sm:$0xff]
  %v22 = vpack.c.bf16 %v19, %v18
  %v23 = vpack.c.bf16 %v21, %v20
  %v24 = vld [vmem:[%s2 + $0xc0] sm:$0xf]
  %v25 = vld [vmem:[%s2 + $0xc8] sm:$0xf]
  %v26 = vld [vmem:[%s2 + $0xd0] sm:$0xf]
  %v27 = vld [vmem:[%s2 + $0xd8] sm:$0xf]
  %v28 = vld [vmem:[%s2 + $0xe0] sm:$0xf]
  %v29 = vld [vmem:[%s3 + $0x9] ss:$0 sm:$0xff]
  %v35 = vunpack.c.l.b16 %v24
  %v36 = vunpack.c.l.b16 %v25
  %v37 = vunpack.c.l.b16 %v26
  %v38 = vunpack.c.l.b16 %v27
  %v39 = vunpack.c.l.b16 %v28
  %v40 = vpack.c.b16 %v36, %v35
  %v41 = vpack.c.b16 %v38, %v37
  %v42 = vpack.c.b16 %v39, %v39
  %46 = vrot.lane.b32.xlu0 %v29, 96
  %v47 = vpop.permute.xlu0 %46
  %vm49 = vcmask 326656
  %v51 = vsel %vm49, %v22, 0
  %v54 = vsel %vm49, %v23, 0
  %vm56 = vcmask 1043456
  %v58 = vsel %vm56, %v42, 0
  %60 = vmatprep.subr.bf16.mxu0 0
  %61 = vmatpush1.bf16.msra.mxu0 %v40
  %62 = vmatprep.subr.bf16.mxu0 0
  %63 = vmatpush1.bf16.msra.mxu0 %v41
  %64 = vmatprep.subr.bf16.mxu0 0
  %65 = vmatpush1.bf16.msra.mxu0 %v58
  %66 = vmatprep.subr.bf16.mxu0 0
  %67 = vmatpush1.bf16.msra.mxu0 0
  %68 = vmatprep.subr.bf16.mxu0 0
  %69 = vmatpush1.bf16.msra.mxu0 0
  %70 = vmatprep.subr.bf16.mxu0 0
  %71 = vmatpush1.bf16.msra.mxu0 0
  %72 = vmatprep.subr.bf16.mxu0 0
  %73 = vmatpush1.bf16.msra.mxu0 0
  %74 = vmatprep.subr.bf16.mxu0 0
  %75 = vmatpush1.bf16.msra.mxu0 0
  %76 = vmatprep.subr.bf16.mxu0 0
  %77 = vmatpush1.bf16.msra.mxu0 0
  %78 = vmatprep.subr.bf16.mxu0 0
  %79 = vmatpush1.bf16.msra.mxu0 0
  %80 = vmatprep.subr.bf16.mxu0 0
  %81 = vmatpush1.bf16.msra.mxu0 0
  %82 = vmatprep.subr.bf16.mxu0 0
  %83 = vmatpush1.bf16.msra.mxu0 0
  %84 = vmatprep.subr.bf16.mxu0 0
  %85 = vmatpush1.bf16.msra.mxu0 0
  %86 = vmatprep.subr.bf16.mxu0 0
  %87 = vmatpush1.bf16.msra.mxu0 0
  %88 = vmatprep.subr.bf16.mxu0 0
  %89 = vmatpush1.bf16.msra.mxu0 0
  %90 = vmatprep.subr.bf16.mxu0 0
  %91 = vmatpush1.bf16.msra.mxu0 0
  %92 = vmatprep.mubr.bf16.mxu0 0
  %93 = vmatmul.mubr.bf16.gmra.mrb[0].mxu0 %v51
  %v94 = vpop.f32.mrb[0].mxu0
  %v95 = vadd.f32 %v47, %v94
  %v96 = vpop.f32.mrb[0].mxu0
  %v97 = vpop.f32.mrb[0].mxu0
  %v98 = vadd.f32 %v47, %v97
  %v99 = vpop.f32.mrb[0].mxu0
  %100 = vmatprep.mubr.bf16.mxu0 0
  %101 = vmatmul.mubr.bf16.gmra.mrb[0].mxu0 %v54
  %v102 = vpop.f32.mrb[0].mxu0
  %v103 = vadd.f32 %v47, %v102
  %v104 = vpop.f32.mrb[0].mxu0
  %v105 = vpop.f32.mrb[0].mxu0
  %v106 = vadd.f32 %v47, %v105
  %v107 = vpop.f32.mrb[0].mxu0
  %108 = vdwg.mxu0
  %v109 = vld [vmem:[%s2] sm:$0xff]
  %v110 = vld [vmem:[%s2 + $0x8] sm:$0xff]
  %v111 = vld [vmem:[%s2 + $0x10] sm:$0xff]
  %v112 = vld [vmem:[%s2 + $0x18] sm:$0xff]
  %v113 = vld [vmem:[%s2 + $0x20] sm:$0xff]
  %v114 = vld [vmem:[%s2 + $0x28] sm:$0xff]
  %v115 = vld [vmem:[%s2 + $0x30] sm:$0xff]
  %v116 = vld [vmem:[%s2 + $0x38] sm:$0xff]
  %v117 = vld [vmem:[%s2 + $0x40] sm:$0xff]
  %v118 = vld [vmem:[%s2 + $0x48] sm:$0xff]
  %v119 = vld [vmem:[%s2 + $0x50] sm:$0xff]
  %v120 = vld [vmem:[%s2 + $0x58] sm:$0xff]
  %v121 = vld [vmem:[%s3] ss:$0 sm:$0xff]
  %v122 = vld [vmem:[%s3 + $0x8] ss:$0 sm:$0xff]
  %v123 = vld [vmem:[%s1] sm:$0xff]
  %v124 = vld [vmem:[%s0] sm:$0xff]
  %v125 = vpack.c.bf16 %v123, %v123
  %v126 = vld [vmem:[%s2 + $0xa0] sm:$0xf]
  %v127 = vld [vmem:[%s2 + $0xa8] sm:$0xf]
  %v128 = vld [vmem:[%s2 + $0xb0] sm:$0xf]
  %v129 = vld [vmem:[%s2 + $0xb8] sm:$0xf]
  %v134 = vunpack.c.l.b16 %v126
  %v135 = vunpack.c.l.b16 %v127
  %v136 = vunpack.c.l.b16 %v128
  %v137 = vunpack.c.l.b16 %v129
  %v138 = vpack.c.b16 %v135, %v134
  %v139 = vpack.c.b16 %v137, %v136
  %vm142 = vcmask 261120
  %v144 = vsel %vm142, %v125, 0
  %146 = vmatprep.subr.bf16.mxu0 0
  %147 = vmatpush1.bf16.msra.mxu0 %v138
  %148 = vmatprep.subr.bf16.mxu0 0
  %149 = vmatpush1.bf16.msra.mxu0 %v139
  %150 = vmatprep.subr.bf16.mxu0 0
  %151 = vmatpush1.bf16.msra.mxu0 0
  %152 = vmatprep.subr.bf16.mxu0 0
  %153 = vmatpush1.bf16.msra.mxu0 0
  %154 = vmatprep.subr.bf16.mxu0 0
  %155 = vmatpush1.bf16.msra.mxu0 0
  %156 = vmatprep.subr.bf16.mxu0 0
  %157 = vmatpush1.bf16.msra.mxu0 0
  %158 = vmatprep.subr.bf16.mxu0 0
  %159 = vmatpush1.bf16.msra.mxu0 0
  %160 = vmatprep.subr.bf16.mxu0 0
  %161 = vmatpush1.bf16.msra.mxu0 0
  %162 = vmatprep.subr.bf16.mxu0 0
  %163 = vmatpush1.bf16.msra.mxu0 0
  %164 = vmatprep.subr.bf16.mxu0 0
  %165 = vmatpush1.bf16.msra.mxu0 0
  %166 = vmatprep.subr.bf16.mxu0 0
  %167 = vmatpush1.bf16.msra.mxu0 0
  %168 = vmatprep.subr.bf16.mxu0 0
  %169 = vmatpush1.bf16.msra.mxu0 0
  %170 = vmatprep.subr.bf16.mxu0 0
  %171 = vmatpush1.bf16.msra.mxu0 0
  %172 = vmatprep.subr.bf16.mxu0 0
  %173 = vmatpush1.bf16.msra.mxu0 0
  %174 = vmatprep.subr.bf16.mxu0 0
  %175 = vmatpush1.bf16.msra.mxu0 0
  %176 = vmatprep.subr.bf16.mxu0 0
  %177 = vmatpush1.bf16.msra.mxu0 0
  %178 = vmatprep.mubr.bf16.mxu0 0
  %179 = vmatmul.mubr.bf16.gmra.mrb[0].mxu0 %v144
  %v180 = vpop.f32.mrb[0].mxu0
  %v181 = vadd.f32 %v95, %v180
  %v182 = vpop.f32.mrb[0].mxu0
  %v183 = vpop.f32.mrb[0].mxu0
  %v184 = vpop.f32.mrb[0].mxu0
  %185 = vdwg.mxu0
  %vm186 = vcmp.gt.f32.partialorder %v181, 0.0
  %v187 = vmin.f32 %v181, 0.0
  %v188 = vmul.f32 %v187, 1.442695
  %v189 = vpow.pop %v188
  %v190 = vsub.f32 %v189, 1.0
  %v191 = vsel %vm186, %v181, %v190
  %v192 = vsel %vm142, %v191, %v123
  %v193 = vpack.c.bf16 %v192, %v192
  %v206 = vunpack.c.l.b16 %v109
  %v207 = vunpack.c.h.b16 %v109
  %v208 = vunpack.c.l.b16 %v110
  %v209 = vunpack.c.h.b16 %v110
  %v210 = vunpack.c.l.b16 %v111
  %v211 = vunpack.c.h.b16 %v111
  %v212 = vunpack.c.l.b16 %v112
  %v213 = vunpack.c.h.b16 %v112
  %v214 = vunpack.c.l.b16 %v113
  %v215 = vunpack.c.h.b16 %v113
  %v216 = vunpack.c.l.b16 %v114
  %v217 = vunpack.c.h.b16 %v114
  %v218 = vunpack.c.l.b16 %v115
  %v219 = vunpack.c.h.b16 %v115
  %v220 = vunpack.c.l.b16 %v116
  %v221 = vunpack.c.h.b16 %v116
  %v222 = vunpack.c.l.b16 %v117
  %v223 = vunpack.c.h.b16 %v117
  %v224 = vunpack.c.l.b16 %v118
  %v225 = vunpack.c.h.b16 %v118
  %v226 = vunpack.c.l.b16 %v119
  %v227 = vunpack.c.h.b16 %v119
  %v228 = vunpack.c.l.b16 %v120
  %v229 = vunpack.c.h.b16 %v120
  %v230 = vpack.c.b16 %v208, %v206
  %v231 = vpack.c.b16 %v209, %v207
  %v232 = vpack.c.b16 %v212, %v210
  %v233 = vpack.c.b16 %v213, %v211
  %v234 = vpack.c.b16 %v216, %v214
  %v235 = vpack.c.b16 %v217, %v215
  %v236 = vpack.c.b16 %v220, %v218
  %v237 = vpack.c.b16 %v221, %v219
  %v238 = vpack.c.b16 %v224, %v222
  %v239 = vpack.c.b16 %v225, %v223
  %v240 = vpack.c.b16 %v228, %v226
  %v241 = vpack.c.b16 %v229, %v227
  %vm254 = vcmask 785408
  %v256 = vsel %vm254, %v193, 0
  %258 = vmatprep.subr.bf16.mxu0 %v231
  %259 = vmatpush1.bf16.msra.mxu0 %v230
  %260 = vmatprep.subr.bf16.mxu0 %v233
  %261 = vmatpush1.bf16.msra.mxu0 %v232
  %262 = vmatprep.subr.bf16.mxu0 %v235
  %263 = vmatpush1.bf16.msra.mxu0 %v234
  %264 = vmatprep.subr.bf16.mxu0 %v237
  %265 = vmatpush1.bf16.msra.mxu0 %v236
  %266 = vmatprep.subr.bf16.mxu0 %v239
  %267 = vmatpush1.bf16.msra.mxu0 %v238
  %268 = vmatprep.subr.bf16.mxu0 %v241
  %269 = vmatpush1.bf16.msra.mxu0 %v240
  %270 = vmatprep.subr.bf16.mxu0 0
  %271 = vmatpush1.bf16.msra.mxu0 0
  %272 = vmatprep.subr.bf16.mxu0 0
  %273 = vmatpush1.bf16.msra.mxu0 0
  %274 = vmatprep.subr.bf16.mxu0 0
  %275 = vmatpush1.bf16.msra.mxu0 0
  %276 = vmatprep.subr.bf16.mxu0 0
  %277 = vmatpush1.bf16.msra.mxu0 0
  %278 = vmatprep.subr.bf16.mxu0 0
  %279 = vmatpush1.bf16.msra.mxu0 0
  %280 = vmatprep.subr.bf16.mxu0 0
  %281 = vmatpush1.bf16.msra.mxu0 0
  %282 = vmatprep.subr.bf16.mxu0 0
  %283 = vmatpush1.bf16.msra.mxu0 0
  %284 = vmatprep.subr.bf16.mxu0 0
  %285 = vmatpush1.bf16.msra.mxu0 0
  %286 = vmatprep.subr.bf16.mxu0 0
  %287 = vmatpush1.bf16.msra.mxu0 0
  %288 = vmatprep.subr.bf16.mxu0 0
  %289 = vmatpush1.bf16.msra.mxu0 0
  %290 = vmatprep.mubr.bf16.mxu0 0
  %291 = vmatmul.mubr.bf16.gmra.mrb[0].mxu0 %v256
  %v292 = vpop.f32.mrb[0].mxu0
  %v293 = vadd.f32 0.0, %v292
  %v294 = vpop.f32.mrb[0].mxu0
  %v295 = vadd.f32 0.0, %v294
  %v296 = vpop.f32.mrb[0].mxu0
  %v297 = vpop.f32.mrb[0].mxu0
  %298 = vdwg.mxu0
  %v299 = vadd.f32 %v293, %v121
  %v300 = vmul.f32 %v299, 0.5
  %v301 = vtanh.pop %v300
  %v302 = vadd.f32 %v301, 1.0
  %v303 = vmul.f32 %v302, 0.5
  %v304 = vadd.f32 %v295, %v122
  %306 = vrot.lane.b32.xlu0 %v304, 64
  %v307 = vpop.permute.xlu0 %306
  %v309 = vmul.f32 %v303, %v307
  %v310 = vadd.f32 %v304, %v309
  %v311 = vtanh.pop %v310
  %v312 = vsub.f32 1.0, %v303
  %314 = vrot.lane.b32.xlu0 %v311, 64
  %v315 = vpop.permute.xlu0 %314
  %v317 = vmul.f32 %v312, %v315
  %319 = vrot.lane.b32.xlu0 %v123, 32
  %v320 = vpop.permute.xlu0 %319
  %v322 = vmul.f32 %v303, %v320
  %v323 = vadd.f32 %v317, %v322
  %v324 = vpack.c.bf16 %v323, %v323
  %v325 = vld [vmem:[%s2 + $0x60] sm:$0xf]
  %v326 = vld [vmem:[%s2 + $0x68] sm:$0xf]
  %v327 = vld [vmem:[%s2 + $0x70] sm:$0xf]
  %v328 = vld [vmem:[%s2 + $0x78] sm:$0xf]
  %v329 = vld [vmem:[%s2 + $0x80] sm:$0xf]
  %v330 = vld [vmem:[%s2 + $0x88] sm:$0xf]
  %v331 = vld [vmem:[%s2 + $0x90] sm:$0xf]
  %v332 = vld [vmem:[%s2 + $0x98] sm:$0xf]
  %334 = vrot.lane.b32.xlu0 %v324, 64
  %v335 = vpop.permute.xlu0 %334
  %v344 = vunpack.c.l.b16 %v325
  %v345 = vunpack.c.l.b16 %v326
  %v346 = vunpack.c.l.b16 %v327
  %v347 = vunpack.c.l.b16 %v328
  %v348 = vunpack.c.l.b16 %v329
  %v349 = vunpack.c.l.b16 %v330
  %v350 = vunpack.c.l.b16 %v331
  %v351 = vunpack.c.l.b16 %v332
  %v352 = vpack.c.b16 %v345, %v344
  %v353 = vpack.c.b16 %v347, %v346
  %v354 = vpack.c.b16 %v349, %v348
  %v355 = vpack.c.b16 %v351, %v350
  %361 = vrot.lane.b32.xlu0 %v95, 96
  %v362 = vpop.permute.xlu0 %361
  %vm364 = vcmask 523264
  %v366 = vsel %vm364, %v335, 0
  %368 = vmatprep.subr.bf16.mxu0 0
  %369 = vmatpush1.bf16.msra.mxu0 %v352
  %370 = vmatprep.subr.bf16.mxu0 0
  %371 = vmatpush1.bf16.msra.mxu0 %v353
  %372 = vmatprep.subr.bf16.mxu0 0
  %373 = vmatpush1.bf16.msra.mxu0 %v354
  %374 = vmatprep.subr.bf16.mxu0 0
  %375 = vmatpush1.bf16.msra.mxu0 %v355
  %376 = vmatprep.subr.bf16.mxu0 0
  %377 = vmatpush1.bf16.msra.mxu0 0
  %378 = vmatprep.subr.bf16.mxu0 0
  %379 = vmatpush1.bf16.msra.mxu0 0
  %380 = vmatprep.subr.bf16.mxu0 0
  %381 = vmatpush1.bf16.msra.mxu0 0
  %382 = vmatprep.subr.bf16.mxu0 0
  %383 = vmatpush1.bf16.msra.mxu0 0
  %384 = vmatprep.subr.bf16.mxu0 0
  %385 = vmatpush1.bf16.msra.mxu0 0
  %386 = vmatprep.subr.bf16.mxu0 0
  %387 = vmatpush1.bf16.msra.mxu0 0
  %388 = vmatprep.subr.bf16.mxu0 0
  %389 = vmatpush1.bf16.msra.mxu0 0
  %390 = vmatprep.subr.bf16.mxu0 0
  %391 = vmatpush1.bf16.msra.mxu0 0
  %392 = vmatprep.subr.bf16.mxu0 0
  %393 = vmatpush1.bf16.msra.mxu0 0
  %394 = vmatprep.subr.bf16.mxu0 0
  %395 = vmatpush1.bf16.msra.mxu0 0
  %396 = vmatprep.subr.bf16.mxu0 0
  %397 = vmatpush1.bf16.msra.mxu0 0
  %398 = vmatprep.subr.bf16.mxu0 0
  %399 = vmatpush1.bf16.msra.mxu0 0
  %400 = vmatprep.mubr.bf16.mxu0 0
  %401 = vmatmul.mubr.bf16.gmra.mrb[0].mxu0 %v366
  %v402 = vpop.f32.mrb[0].mxu0
  %v403 = vadd.f32 %v362, %v402
  %v404 = vpop.f32.mrb[0].mxu0
  %v405 = vpop.f32.mrb[0].mxu0
  %v406 = vpop.f32.mrb[0].mxu0
  %407 = vdwg.mxu0
  %vm408 = vcmp.gt.f32.partialorder %v403, 0.0
  %v409 = vmin.f32 %v403, 0.0
  %v410 = vmul.f32 %v409, 1.442695
  %v411 = vpow.pop %v410
  %v412 = vsub.f32 %v411, 1.0
  %v413 = vsel %vm408, %v403, %v412
  %v414 = vpack.c.bf16 %v413, %v413
  %v415 = vld [vmem:[%s3 + $0x1] ss:$0 sm:$0xff]
  %416 = vrot.lane.b32.xlu0 %v138, 96
  %v417 = vpop.permute.xlu0 %416
  %418 = vrot.lane.b32.xlu0 %v139, 96
  %v419 = vpop.permute.xlu0 %418
  %v423 = vsel %vm142, %v414, 0
  %425 = vmatprep.subr.bf16.mxu0 0
  %426 = vmatpush1.bf16.msra.mxu0 %v417
  %427 = vmatprep.subr.bf16.mxu0 0
  %428 = vmatpush1.bf16.msra.mxu0 %v419
  %429 = vmatprep.subr.bf16.mxu0 0
  %430 = vmatpush1.bf16.msra.mxu0 0
  %431 = vmatprep.subr.bf16.mxu0 0
  %432 = vmatpush1.bf16.msra.mxu0 0
  %433 = vmatprep.subr.bf16.mxu0 0
  %434 = vmatpush1.bf16.msra.mxu0 0
  %435 = vmatprep.subr.bf16.mxu0 0
  %436 = vmatpush1.bf16.msra.mxu0 0
  %437 = vmatprep.subr.bf16.mxu0 0
  %438 = vmatpush1.bf16.msra.mxu0 0
  %439 = vmatprep.subr.bf16.mxu0 0
  %440 = vmatpush1.bf16.msra.mxu0 0
  %441 = vmatprep.subr.bf16.mxu0 0
  %442 = vmatpush1.bf16.msra.mxu0 0
  %443 = vmatprep.subr.bf16.mxu0 0
  %444 = vmatpush1.bf16.msra.mxu0 0
  %445 = vmatprep.subr.bf16.mxu0 0
  %446 = vmatpush1.bf16.msra.mxu0 0
  %447 = vmatprep.subr.bf16.mxu0 0
  %448 = vmatpush1.bf16.msra.mxu0 0
  %449 = vmatprep.subr.bf16.mxu0 0
  %450 = vmatpush1.bf16.msra.mxu0 0
  %451 = vmatprep.subr.bf16.mxu0 0
  %452 = vmatpush1.bf16.msra.mxu0 0
  %453 = vmatprep.subr.bf16.mxu0 0
  %454 = vmatpush1.bf16.msra.mxu0 0
  %455 = vmatprep.subr.bf16.mxu0 0
  %456 = vmatpush1.bf16.msra.mxu0 0
  %457 = vmatprep.mubr.bf16.mxu0 0
  %458 = vmatmul.mubr.bf16.gmra.mrb[0].mxu0 %v423
  %v459 = vpop.f32.mrb[0].mxu0
  %v460 = vadd.f32 %v415, %v459
  %v461 = vpop.f32.mrb[0].mxu0
  %v462 = vpop.f32.mrb[0].mxu0
  %v463 = vpop.f32.mrb[0].mxu0
  %464 = vdwg.mxu0
  %v465 = vmax.f32 %v460, 0.0
  %v466 = vand.u32 2147483647, %v460
  %v467 = vsub.f32 0.0, %v466
  %v468 = vmul.f32 %v467, 1.442695
  %v469 = vpow.pop %v468
  %v470 = vadd.f32 %v469, 1.0
  %v471 = vlog2.pop %v470
  %v472 = vmul.f32 %v471, 0.6931472
  %v473 = vadd.f32 %v465, %v472
  %v474 = vadd.f32 %v473, 0.1
  %476 = vrot.lane.b32.xlu0 %v124, 120
  %v477 = vpop.permute.xlu0 %476
  %v479 = vmul.f32 %v474, %v477
  %481 = vrot.lane.b32.xlu0 %v479, 96
  %v482 = vpop.permute.xlu0 %481
  %v484 = vadd.f32 %v460, %v482
  %486 = vrot.lane.b32.xlu0 %v484, 64
  %v487 = vpop.permute.xlu0 %486
  %490 = vrot.lane.b32.xlu0 %v323, 32
  %v491 = vpop.permute.xlu0 %490
  %v493 = vsel %vm142, %v460, %v474
  %v494 = vsel %vm364, %v493, %v487
  %v495 = vsel %vm254, %v494, %v491
  %v496 = vsel %vm142, %v491, 0.0
  %497 = vst [vmem:[%s4] sm:$0xff] %v495
  %498 = vst [vmem:[%s4 + $0x8] sm:$0xff] %v496
  %v499 = vld [vmem:[%s0 + $0x8] sm:$0xff]
  %v500 = vpack.c.bf16 %v484, %v484
  %v501 = vld [vmem:[%s2 + $0xa0] sm:$0xf]
  %v502 = vld [vmem:[%s2 + $0xa8] sm:$0xf]
  %v503 = vld [vmem:[%s2 + $0xb0] sm:$0xf]
  %v504 = vld [vmem:[%s2 + $0xb8] sm:$0xf]
  %v509 = vunpack.c.l.b16 %v501
  %v510 = vunpack.c.l.b16 %v502
  %v511 = vunpack.c.l.b16 %v503
  %v512 = vunpack.c.l.b16 %v504
  %v513 = vpack.c.b16 %v510, %v509
  %v514 = vpack.c.b16 %v512, %v511
  %v518 = vsel %vm142, %v500, 0
  %520 = vmatprep.subr.bf16.mxu0 0
  %521 = vmatpush1.bf16.msra.mxu0 %v513
  %522 = vmatprep.subr.bf16.mxu0 0
  %523 = vmatpush1.bf16.msra.mxu0 %v514
  %524 = vmatprep.subr.bf16.mxu0 0
  %525 = vmatpush1.bf16.msra.mxu0 0
  %526 = vmatprep.subr.bf16.mxu0 0
  %527 = vmatpush1.bf16.msra.mxu0 0
  %528 = vmatprep.subr.bf16.mxu0 0
  %529 = vmatpush1.bf16.msra.mxu0 0
  %530 = vmatprep.subr.bf16.mxu0 0
  %531 = vmatpush1.bf16.msra.mxu0 0
  %532 = vmatprep.subr.bf16.mxu0 0
  %533 = vmatpush1.bf16.msra.mxu0 0
  %534 = vmatprep.subr.bf16.mxu0 0
  %535 = vmatpush1.bf16.msra.mxu0 0
  %536 = vmatprep.subr.bf16.mxu0 0
  %537 = vmatpush1.bf16.msra.mxu0 0
  %538 = vmatprep.subr.bf16.mxu0 0
  %539 = vmatpush1.bf16.msra.mxu0 0
  %540 = vmatprep.subr.bf16.mxu0 0
  %541 = vmatpush1.bf16.msra.mxu0 0
  %542 = vmatprep.subr.bf16.mxu0 0
  %543 = vmatpush1.bf16.msra.mxu0 0
  %544 = vmatprep.subr.bf16.mxu0 0
  %545 = vmatpush1.bf16.msra.mxu0 0
  %546 = vmatprep.subr.bf16.mxu0 0
  %547 = vmatpush1.bf16.msra.mxu0 0
  %548 = vmatprep.subr.bf16.mxu0 0
  %549 = vmatpush1.bf16.msra.mxu0 0
  %550 = vmatprep.subr.bf16.mxu0 0
  %551 = vmatpush1.bf16.msra.mxu0 0
  %552 = vmatprep.mubr.bf16.mxu0 0
  %553 = vmatmul.mubr.bf16.gmra.mrb[0].mxu0 %v518
  %v554 = vpop.f32.mrb[0].mxu0
  %v555 = vadd.f32 %v98, %v554
  %v556 = vpop.f32.mrb[0].mxu0
  %v557 = vpop.f32.mrb[0].mxu0
  %v558 = vpop.f32.mrb[0].mxu0
  %559 = vdwg.mxu0
  %vm560 = vcmp.gt.f32.partialorder %v555, 0.0
  %v561 = vmin.f32 %v555, 0.0
  %v562 = vmul.f32 %v561, 1.442695
  %v563 = vpow.pop %v562
  %v564 = vsub.f32 %v563, 1.0
  %v565 = vsel %vm560, %v555, %v564
  %566 = vrot.lane.b32.xlu0 %v323, 96
  %v567 = vpop.permute.xlu0 %566
  %v569 = vsel %vm142, %v565, %v567
  %v570 = vpack.c.bf16 %v569, %v569
  %v572 = vsel %vm254, %v570, 0
  %574 = vmatprep.subr.bf16.mxu0 %v231
  %575 = vmatpush1.bf16.msra.mxu0 %v230
  %576 = vmatprep.subr.bf16.mxu0 %v233
  %577 = vmatpush1.bf16.msra.mxu0 %v232
  %578 = vmatprep.subr.bf16.mxu0 %v235
  %579 = vmatpush1.bf16.msra.mxu0 %v234
  %580 = vmatprep.subr.bf16.mxu0 %v237
  %581 = vmatpush1.bf16.msra.mxu0 %v236
  %582 = vmatprep.subr.bf16.mxu0 %v239
  %583 = vmatpush1.bf16.msra.mxu0 %v238
  %584 = vmatprep.subr.bf16.mxu0 %v241
  %585 = vmatpush1.bf16.msra.mxu0 %v240
  %586 = vmatprep.subr.bf16.mxu0 0
  %587 = vmatpush1.bf16.msra.mxu0 0
  %588 = vmatprep.subr.bf16.mxu0 0
  %589 = vmatpush1.bf16.msra.mxu0 0
  %590 = vmatprep.subr.bf16.mxu0 0
  %591 = vmatpush1.bf16.msra.mxu0 0
  %592 = vmatprep.subr.bf16.mxu0 0
  %593 = vmatpush1.bf16.msra.mxu0 0
  %594 = vmatprep.subr.bf16.mxu0 0
  %595 = vmatpush1.bf16.msra.mxu0 0
  %596 = vmatprep.subr.bf16.mxu0 0
  %597 = vmatpush1.bf16.msra.mxu0 0
  %598 = vmatprep.subr.bf16.mxu0 0
  %599 = vmatpush1.bf16.msra.mxu0 0
  %600 = vmatprep.subr.bf16.mxu0 0
  %601 = vmatpush1.bf16.msra.mxu0 0
  %602 = vmatprep.subr.bf16.mxu0 0
  %603 = vmatpush1.bf16.msra.mxu0 0
  %604 = vmatprep.subr.bf16.mxu0 0
  %605 = vmatpush1.bf16.msra.mxu0 0
  %606 = vmatprep.mubr.bf16.mxu0 0
  %607 = vmatmul.mubr.bf16.gmra.mrb[0].mxu0 %v572
  %v608 = vpop.f32.mrb[0].mxu0
  %v609 = vadd.f32 0.0, %v608
  %v610 = vpop.f32.mrb[0].mxu0
  %v611 = vadd.f32 0.0, %v610
  %v612 = vpop.f32.mrb[0].mxu0
  %v613 = vpop.f32.mrb[0].mxu0
  %614 = vdwg.mxu0
  %v615 = vadd.f32 %v609, %v121
  %v616 = vmul.f32 %v615, 0.5
  %v617 = vtanh.pop %v616
  %v618 = vadd.f32 %v617, 1.0
  %v619 = vmul.f32 %v618, 0.5
  %v620 = vadd.f32 %v611, %v122
  %622 = vrot.lane.b32.xlu0 %v620, 64
  %v623 = vpop.permute.xlu0 %622
  %v625 = vmul.f32 %v619, %v623
  %v626 = vadd.f32 %v620, %v625
  %v627 = vtanh.pop %v626
  %v628 = vsub.f32 1.0, %v619
  %630 = vrot.lane.b32.xlu0 %v627, 64
  %v631 = vpop.permute.xlu0 %630
  %v633 = vmul.f32 %v628, %v631
  %v634 = vmul.f32 %v619, %v323
  %v635 = vadd.f32 %v633, %v634
  %v636 = vpack.c.bf16 %v635, %v635
  %v637 = vld [vmem:[%s2 + $0x60] sm:$0xf]
  %v638 = vld [vmem:[%s2 + $0x68] sm:$0xf]
  %v639 = vld [vmem:[%s2 + $0x70] sm:$0xf]
  %v640 = vld [vmem:[%s2 + $0x78] sm:$0xf]
  %v641 = vld [vmem:[%s2 + $0x80] sm:$0xf]
  %v642 = vld [vmem:[%s2 + $0x88] sm:$0xf]
  %v643 = vld [vmem:[%s2 + $0x90] sm:$0xf]
  %v644 = vld [vmem:[%s2 + $0x98] sm:$0xf]
  %646 = vrot.lane.b32.xlu0 %v636, 64
  %v647 = vpop.permute.xlu0 %646
  %v656 = vunpack.c.l.b16 %v637
  %v657 = vunpack.c.l.b16 %v638
  %v658 = vunpack.c.l.b16 %v639
  %v659 = vunpack.c.l.b16 %v640
  %v660 = vunpack.c.l.b16 %v641
  %v661 = vunpack.c.l.b16 %v642
  %v662 = vunpack.c.l.b16 %v643
  %v663 = vunpack.c.l.b16 %v644
  %v664 = vpack.c.b16 %v657, %v656
  %v665 = vpack.c.b16 %v659, %v658
  %v666 = vpack.c.b16 %v661, %v660
  %v667 = vpack.c.b16 %v663, %v662
  %673 = vrot.lane.b32.xlu0 %v98, 96
  %v674 = vpop.permute.xlu0 %673
  %v677 = vsel %vm364, %v647, 0
  %679 = vmatprep.subr.bf16.mxu0 0
  %680 = vmatpush1.bf16.msra.mxu0 %v664
  %681 = vmatprep.subr.bf16.mxu0 0
  %682 = vmatpush1.bf16.msra.mxu0 %v665
  %683 = vmatprep.subr.bf16.mxu0 0
  %684 = vmatpush1.bf16.msra.mxu0 %v666
  %685 = vmatprep.subr.bf16.mxu0 0
  %686 = vmatpush1.bf16.msra.mxu0 %v667
  %687 = vmatprep.subr.bf16.mxu0 0
  %688 = vmatpush1.bf16.msra.mxu0 0
  %689 = vmatprep.subr.bf16.mxu0 0
  %690 = vmatpush1.bf16.msra.mxu0 0
  %691 = vmatprep.subr.bf16.mxu0 0
  %692 = vmatpush1.bf16.msra.mxu0 0
  %693 = vmatprep.subr.bf16.mxu0 0
  %694 = vmatpush1.bf16.msra.mxu0 0
  %695 = vmatprep.subr.bf16.mxu0 0
  %696 = vmatpush1.bf16.msra.mxu0 0
  %697 = vmatprep.subr.bf16.mxu0 0
  %698 = vmatpush1.bf16.msra.mxu0 0
  %699 = vmatprep.subr.bf16.mxu0 0
  %700 = vmatpush1.bf16.msra.mxu0 0
  %701 = vmatprep.subr.bf16.mxu0 0
  %702 = vmatpush1.bf16.msra.mxu0 0
  %703 = vmatprep.subr.bf16.mxu0 0
  %704 = vmatpush1.bf16.msra.mxu0 0
  %705 = vmatprep.subr.bf16.mxu0 0
  %706 = vmatpush1.bf16.msra.mxu0 0
  %707 = vmatprep.subr.bf16.mxu0 0
  %708 = vmatpush1.bf16.msra.mxu0 0
  %709 = vmatprep.subr.bf16.mxu0 0
  %710 = vmatpush1.bf16.msra.mxu0 0
  %711 = vmatprep.mubr.bf16.mxu0 0
  %712 = vmatmul.mubr.bf16.gmra.mrb[0].mxu0 %v677
  %v713 = vpop.f32.mrb[0].mxu0
  %v714 = vadd.f32 %v674, %v713
  %v715 = vpop.f32.mrb[0].mxu0
  %v716 = vpop.f32.mrb[0].mxu0
  %v717 = vpop.f32.mrb[0].mxu0
  %718 = vdwg.mxu0
  %vm719 = vcmp.gt.f32.partialorder %v714, 0.0
  %v720 = vmin.f32 %v714, 0.0
  %v721 = vmul.f32 %v720, 1.442695
  %v722 = vpow.pop %v721
  %v723 = vsub.f32 %v722, 1.0
  %v724 = vsel %vm719, %v714, %v723
  %v725 = vpack.c.bf16 %v724, %v724
  %v726 = vld [vmem:[%s3 + $0x1] ss:$0 sm:$0xff]
  %727 = vrot.lane.b32.xlu0 %v513, 96
  %v728 = vpop.permute.xlu0 %727
  %729 = vrot.lane.b32.xlu0 %v514, 96
  %v730 = vpop.permute.xlu0 %729
  %v734 = vsel %vm142, %v725, 0
  %736 = vmatprep.subr.bf16.mxu0 0
  %737 = vmatpush1.bf16.msra.mxu0 %v728
  %738 = vmatprep.subr.bf16.mxu0 0
  %739 = vmatpush1.bf16.msra.mxu0 %v730
  %740 = vmatprep.subr.bf16.mxu0 0
  %741 = vmatpush1.bf16.msra.mxu0 0
  %742 = vmatprep.subr.bf16.mxu0 0
  %743 = vmatpush1.bf16.msra.mxu0 0
  %744 = vmatprep.subr.bf16.mxu0 0
  %745 = vmatpush1.bf16.msra.mxu0 0
  %746 = vmatprep.subr.bf16.mxu0 0
  %747 = vmatpush1.bf16.msra.mxu0 0
  %748 = vmatprep.subr.bf16.mxu0 0
  %749 = vmatpush1.bf16.msra.mxu0 0
  %750 = vmatprep.subr.bf16.mxu0 0
  %751 = vmatpush1.bf16.msra.mxu0 0
  %752 = vmatprep.subr.bf16.mxu0 0
  %753 = vmatpush1.bf16.msra.mxu0 0
  %754 = vmatprep.subr.bf16.mxu0 0
  %755 = vmatpush1.bf16.msra.mxu0 0
  %756 = vmatprep.subr.bf16.mxu0 0
  %757 = vmatpush1.bf16.msra.mxu0 0
  %758 = vmatprep.subr.bf16.mxu0 0
  %759 = vmatpush1.bf16.msra.mxu0 0
  %760 = vmatprep.subr.bf16.mxu0 0
  %761 = vmatpush1.bf16.msra.mxu0 0
  %762 = vmatprep.subr.bf16.mxu0 0
  %763 = vmatpush1.bf16.msra.mxu0 0
  %764 = vmatprep.subr.bf16.mxu0 0
  %765 = vmatpush1.bf16.msra.mxu0 0
  %766 = vmatprep.subr.bf16.mxu0 0
  %767 = vmatpush1.bf16.msra.mxu0 0
  %768 = vmatprep.mubr.bf16.mxu0 0
  %769 = vmatmul.mubr.bf16.gmra.mrb[0].mxu0 %v734
  %v770 = vpop.f32.mrb[0].mxu0
  %v771 = vadd.f32 %v726, %v770
  %v772 = vpop.f32.mrb[0].mxu0
  %v773 = vpop.f32.mrb[0].mxu0
  %v774 = vpop.f32.mrb[0].mxu0
  %775 = vdwg.mxu0
  %v776 = vmax.f32 %v771, 0.0
  %v777 = vand.u32 2147483647, %v771
  %v778 = vsub.f32 0.0, %v777
  %v779 = vmul.f32 %v778, 1.442695
  %v780 = vpow.pop %v779
  %v781 = vadd.f32 %v780, 1.0
  %v782 = vlog2.pop %v781
  %v783 = vmul.f32 %v782, 0.6931472
  %v784 = vadd.f32 %v776, %v783
  %v785 = vadd.f32 %v784, 0.1
  %787 = vrot.lane.b32.xlu0 %v499, 120
  %v788 = vpop.permute.xlu0 %787
  %v790 = vmul.f32 %v785, %v788
  %792 = vrot.lane.b32.xlu0 %v790, 96
  %v793 = vpop.permute.xlu0 %792
  %v795 = vadd.f32 %v771, %v793
  %797 = vrot.lane.b32.xlu0 %v795, 64
  %v798 = vpop.permute.xlu0 %797
  %801 = vrot.lane.b32.xlu0 %v635, 32
  %v802 = vpop.permute.xlu0 %801
  %v804 = vsel %vm142, %v771, %v785
  %v805 = vsel %vm364, %v804, %v798
  %v806 = vsel %vm254, %v805, %v802
  %v807 = vsel %vm142, %v802, 0.0
  %808 = vst [vmem:[%s4 + $0x10] sm:$0xff] %v806
  %809 = vst [vmem:[%s4 + $0x18] sm:$0xff] %v807
  %v810 = vld [vmem:[%s0 + $0x10] sm:$0xff]
  %v811 = vpack.c.bf16 %v795, %v795
  %v812 = vld [vmem:[%s2 + $0xa0] sm:$0xf]
  %v813 = vld [vmem:[%s2 + $0xa8] sm:$0xf]
  %v814 = vld [vmem:[%s2 + $0xb0] sm:$0xf]
  %v815 = vld [vmem:[%s2 + $0xb8] sm:$0xf]
  %v820 = vunpack.c.l.b16 %v812
  %v821 = vunpack.c.l.b16 %v813
  %v822 = vunpack.c.l.b16 %v814
  %v823 = vunpack.c.l.b16 %v815
  %v824 = vpack.c.b16 %v821, %v820
  %v825 = vpack.c.b16 %v823, %v822
  %v829 = vsel %vm142, %v811, 0
  %831 = vmatprep.subr.bf16.mxu0 0
  %832 = vmatpush1.bf16.msra.mxu0 %v824
  %833 = vmatprep.subr.bf16.mxu0 0
  %834 = vmatpush1.bf16.msra.mxu0 %v825
  %835 = vmatprep.subr.bf16.mxu0 0
  %836 = vmatpush1.bf16.msra.mxu0 0
  %837 = vmatprep.subr.bf16.mxu0 0
  %838 = vmatpush1.bf16.msra.mxu0 0
  %839 = vmatprep.subr.bf16.mxu0 0
  %840 = vmatpush1.bf16.msra.mxu0 0
  %841 = vmatprep.subr.bf16.mxu0 0
  %842 = vmatpush1.bf16.msra.mxu0 0
  %843 = vmatprep.subr.bf16.mxu0 0
  %844 = vmatpush1.bf16.msra.mxu0 0
  %845 = vmatprep.subr.bf16.mxu0 0
  %846 = vmatpush1.bf16.msra.mxu0 0
  %847 = vmatprep.subr.bf16.mxu0 0
  %848 = vmatpush1.bf16.msra.mxu0 0
  %849 = vmatprep.subr.bf16.mxu0 0
  %850 = vmatpush1.bf16.msra.mxu0 0
  %851 = vmatprep.subr.bf16.mxu0 0
  %852 = vmatpush1.bf16.msra.mxu0 0
  %853 = vmatprep.subr.bf16.mxu0 0
  %854 = vmatpush1.bf16.msra.mxu0 0
  %855 = vmatprep.subr.bf16.mxu0 0
  %856 = vmatpush1.bf16.msra.mxu0 0
  %857 = vmatprep.subr.bf16.mxu0 0
  %858 = vmatpush1.bf16.msra.mxu0 0
  %859 = vmatprep.subr.bf16.mxu0 0
  %860 = vmatpush1.bf16.msra.mxu0 0
  %861 = vmatprep.subr.bf16.mxu0 0
  %862 = vmatpush1.bf16.msra.mxu0 0
  %863 = vmatprep.mubr.bf16.mxu0 0
  %864 = vmatmul.mubr.bf16.gmra.mrb[0].mxu0 %v829
  %v865 = vpop.f32.mrb[0].mxu0
  %v866 = vadd.f32 %v103, %v865
  %v867 = vpop.f32.mrb[0].mxu0
  %v868 = vpop.f32.mrb[0].mxu0
  %v869 = vpop.f32.mrb[0].mxu0
  %870 = vdwg.mxu0
  %vm871 = vcmp.gt.f32.partialorder %v866, 0.0
  %v872 = vmin.f32 %v866, 0.0
  %v873 = vmul.f32 %v872, 1.442695
  %v874 = vpow.pop %v873
  %v875 = vsub.f32 %v874, 1.0
  %v876 = vsel %vm871, %v866, %v875
  %877 = vrot.lane.b32.xlu0 %v635, 96
  %v878 = vpop.permute.xlu0 %877
  %v880 = vsel %vm142, %v876, %v878
  %v881 = vpack.c.bf16 %v880, %v880
  %v883 = vsel %vm254, %v881, 0
  %885 = vmatprep.subr.bf16.mxu0 %v231
  %886 = vmatpush1.bf16.msra.mxu0 %v230
  %887 = vmatprep.subr.bf16.mxu0 %v233
  %888 = vmatpush1.bf16.msra.mxu0 %v232
  %889 = vmatprep.subr.bf16.mxu0 %v235
  %890 = vmatpush1.bf16.msra.mxu0 %v234
  %891 = vmatprep.subr.bf16.mxu0 %v237
  %892 = vmatpush1.bf16.msra.mxu0 %v236
  %893 = vmatprep.subr.bf16.mxu0 %v239
  %894 = vmatpush1.bf16.msra.mxu0 %v238
  %895 = vmatprep.subr.bf16.mxu0 %v241
  %896 = vmatpush1.bf16.msra.mxu0 %v240
  %897 = vmatprep.subr.bf16.mxu0 0
  %898 = vmatpush1.bf16.msra.mxu0 0
  %899 = vmatprep.subr.bf16.mxu0 0
  %900 = vmatpush1.bf16.msra.mxu0 0
  %901 = vmatprep.subr.bf16.mxu0 0
  %902 = vmatpush1.bf16.msra.mxu0 0
  %903 = vmatprep.subr.bf16.mxu0 0
  %904 = vmatpush1.bf16.msra.mxu0 0
  %905 = vmatprep.subr.bf16.mxu0 0
  %906 = vmatpush1.bf16.msra.mxu0 0
  %907 = vmatprep.subr.bf16.mxu0 0
  %908 = vmatpush1.bf16.msra.mxu0 0
  %909 = vmatprep.subr.bf16.mxu0 0
  %910 = vmatpush1.bf16.msra.mxu0 0
  %911 = vmatprep.subr.bf16.mxu0 0
  %912 = vmatpush1.bf16.msra.mxu0 0
  %913 = vmatprep.subr.bf16.mxu0 0
  %914 = vmatpush1.bf16.msra.mxu0 0
  %915 = vmatprep.subr.bf16.mxu0 0
  %916 = vmatpush1.bf16.msra.mxu0 0
  %917 = vmatprep.mubr.bf16.mxu0 0
  %918 = vmatmul.mubr.bf16.gmra.mrb[0].mxu0 %v883
  %v919 = vpop.f32.mrb[0].mxu0
  %v920 = vadd.f32 0.0, %v919
  %v921 = vpop.f32.mrb[0].mxu0
  %v922 = vadd.f32 0.0, %v921
  %v923 = vpop.f32.mrb[0].mxu0
  %v924 = vpop.f32.mrb[0].mxu0
  %925 = vdwg.mxu0
  %v926 = vadd.f32 %v920, %v121
  %v927 = vmul.f32 %v926, 0.5
  %v928 = vtanh.pop %v927
  %v929 = vadd.f32 %v928, 1.0
  %v930 = vmul.f32 %v929, 0.5
  %v931 = vadd.f32 %v922, %v122
  %933 = vrot.lane.b32.xlu0 %v931, 64
  %v934 = vpop.permute.xlu0 %933
  %v936 = vmul.f32 %v930, %v934
  %v937 = vadd.f32 %v931, %v936
  %v938 = vtanh.pop %v937
  %v939 = vsub.f32 1.0, %v930
  %941 = vrot.lane.b32.xlu0 %v938, 64
  %v942 = vpop.permute.xlu0 %941
  %v944 = vmul.f32 %v939, %v942
  %v945 = vmul.f32 %v930, %v635
  %v946 = vadd.f32 %v944, %v945
  %v947 = vpack.c.bf16 %v946, %v946
  %v948 = vld [vmem:[%s2 + $0x60] sm:$0xf]
  %v949 = vld [vmem:[%s2 + $0x68] sm:$0xf]
  %v950 = vld [vmem:[%s2 + $0x70] sm:$0xf]
  %v951 = vld [vmem:[%s2 + $0x78] sm:$0xf]
  %v952 = vld [vmem:[%s2 + $0x80] sm:$0xf]
  %v953 = vld [vmem:[%s2 + $0x88] sm:$0xf]
  %v954 = vld [vmem:[%s2 + $0x90] sm:$0xf]
  %v955 = vld [vmem:[%s2 + $0x98] sm:$0xf]
  %957 = vrot.lane.b32.xlu0 %v947, 64
  %v958 = vpop.permute.xlu0 %957
  %v967 = vunpack.c.l.b16 %v948
  %v968 = vunpack.c.l.b16 %v949
  %v969 = vunpack.c.l.b16 %v950
  %v970 = vunpack.c.l.b16 %v951
  %v971 = vunpack.c.l.b16 %v952
  %v972 = vunpack.c.l.b16 %v953
  %v973 = vunpack.c.l.b16 %v954
  %v974 = vunpack.c.l.b16 %v955
  %v975 = vpack.c.b16 %v968, %v967
  %v976 = vpack.c.b16 %v970, %v969
  %v977 = vpack.c.b16 %v972, %v971
  %v978 = vpack.c.b16 %v974, %v973
  %984 = vrot.lane.b32.xlu0 %v103, 96
  %v985 = vpop.permute.xlu0 %984
  %v988 = vsel %vm364, %v958, 0
  %990 = vmatprep.subr.bf16.mxu0 0
  %991 = vmatpush1.bf16.msra.mxu0 %v975
  %992 = vmatprep.subr.bf16.mxu0 0
  %993 = vmatpush1.bf16.msra.mxu0 %v976
  %994 = vmatprep.subr.bf16.mxu0 0
  %995 = vmatpush1.bf16.msra.mxu0 %v977
  %996 = vmatprep.subr.bf16.mxu0 0
  %997 = vmatpush1.bf16.msra.mxu0 %v978
  %998 = vmatprep.subr.bf16.mxu0 0
  %999 = vmatpush1.bf16.msra.mxu0 0
  %1000 = vmatprep.subr.bf16.mxu0 0
  %1001 = vmatpush1.bf16.msra.mxu0 0
  %1002 = vmatprep.subr.bf16.mxu0 0
  %1003 = vmatpush1.bf16.msra.mxu0 0
  %1004 = vmatprep.subr.bf16.mxu0 0
  %1005 = vmatpush1.bf16.msra.mxu0 0
  %1006 = vmatprep.subr.bf16.mxu0 0
  %1007 = vmatpush1.bf16.msra.mxu0 0
  %1008 = vmatprep.subr.bf16.mxu0 0
  %1009 = vmatpush1.bf16.msra.mxu0 0
  %1010 = vmatprep.subr.bf16.mxu0 0
  %1011 = vmatpush1.bf16.msra.mxu0 0
  %1012 = vmatprep.subr.bf16.mxu0 0
  %1013 = vmatpush1.bf16.msra.mxu0 0
  %1014 = vmatprep.subr.bf16.mxu0 0
  %1015 = vmatpush1.bf16.msra.mxu0 0
  %1016 = vmatprep.subr.bf16.mxu0 0
  %1017 = vmatpush1.bf16.msra.mxu0 0
  %1018 = vmatprep.subr.bf16.mxu0 0
  %1019 = vmatpush1.bf16.msra.mxu0 0
  %1020 = vmatprep.subr.bf16.mxu0 0
  %1021 = vmatpush1.bf16.msra.mxu0 0
  %1022 = vmatprep.mubr.bf16.mxu0 0
  %1023 = vmatmul.mubr.bf16.gmra.mrb[0].mxu0 %v988
  %v1024 = vpop.f32.mrb[0].mxu0
  %v1025 = vadd.f32 %v985, %v1024
  %v1026 = vpop.f32.mrb[0].mxu0
  %v1027 = vpop.f32.mrb[0].mxu0
  %v1028 = vpop.f32.mrb[0].mxu0
  %1029 = vdwg.mxu0
  %vm1030 = vcmp.gt.f32.partialorder %v1025, 0.0
  %v1031 = vmin.f32 %v1025, 0.0
  %v1032 = vmul.f32 %v1031, 1.442695
  %v1033 = vpow.pop %v1032
  %v1034 = vsub.f32 %v1033, 1.0
  %v1035 = vsel %vm1030, %v1025, %v1034
  %v1036 = vpack.c.bf16 %v1035, %v1035
  %v1037 = vld [vmem:[%s3 + $0x1] ss:$0 sm:$0xff]
  %1038 = vrot.lane.b32.xlu0 %v824, 96
  %v1039 = vpop.permute.xlu0 %1038
  %1040 = vrot.lane.b32.xlu0 %v825, 96
  %v1041 = vpop.permute.xlu0 %1040
  %v1045 = vsel %vm142, %v1036, 0
  %1047 = vmatprep.subr.bf16.mxu0 0
  %1048 = vmatpush1.bf16.msra.mxu0 %v1039
  %1049 = vmatprep.subr.bf16.mxu0 0
  %1050 = vmatpush1.bf16.msra.mxu0 %v1041
  %1051 = vmatprep.subr.bf16.mxu0 0
  %1052 = vmatpush1.bf16.msra.mxu0 0
  %1053 = vmatprep.subr.bf16.mxu0 0
  %1054 = vmatpush1.bf16.msra.mxu0 0
  %1055 = vmatprep.subr.bf16.mxu0 0
  %1056 = vmatpush1.bf16.msra.mxu0 0
  %1057 = vmatprep.subr.bf16.mxu0 0
  %1058 = vmatpush1.bf16.msra.mxu0 0
  %1059 = vmatprep.subr.bf16.mxu0 0
  %1060 = vmatpush1.bf16.msra.mxu0 0
  %1061 = vmatprep.subr.bf16.mxu0 0
  %1062 = vmatpush1.bf16.msra.mxu0 0
  %1063 = vmatprep.subr.bf16.mxu0 0
  %1064 = vmatpush1.bf16.msra.mxu0 0
  %1065 = vmatprep.subr.bf16.mxu0 0
  %1066 = vmatpush1.bf16.msra.mxu0 0
  %1067 = vmatprep.subr.bf16.mxu0 0
  %1068 = vmatpush1.bf16.msra.mxu0 0
  %1069 = vmatprep.subr.bf16.mxu0 0
  %1070 = vmatpush1.bf16.msra.mxu0 0
  %1071 = vmatprep.subr.bf16.mxu0 0
  %1072 = vmatpush1.bf16.msra.mxu0 0
  %1073 = vmatprep.subr.bf16.mxu0 0
  %1074 = vmatpush1.bf16.msra.mxu0 0
  %1075 = vmatprep.subr.bf16.mxu0 0
  %1076 = vmatpush1.bf16.msra.mxu0 0
  %1077 = vmatprep.subr.bf16.mxu0 0
  %1078 = vmatpush1.bf16.msra.mxu0 0
  %1079 = vmatprep.mubr.bf16.mxu0 0
  %1080 = vmatmul.mubr.bf16.gmra.mrb[0].mxu0 %v1045
  %v1081 = vpop.f32.mrb[0].mxu0
  %v1082 = vadd.f32 %v1037, %v1081
  %v1083 = vpop.f32.mrb[0].mxu0
  %v1084 = vpop.f32.mrb[0].mxu0
  %v1085 = vpop.f32.mrb[0].mxu0
  %1086 = vdwg.mxu0
  %v1087 = vmax.f32 %v1082, 0.0
  %v1088 = vand.u32 2147483647, %v1082
  %v1089 = vsub.f32 0.0, %v1088
  %v1090 = vmul.f32 %v1089, 1.442695
  %v1091 = vpow.pop %v1090
  %v1092 = vadd.f32 %v1091, 1.0
  %v1093 = vlog2.pop %v1092
  %v1094 = vmul.f32 %v1093, 0.6931472
  %v1095 = vadd.f32 %v1087, %v1094
  %v1096 = vadd.f32 %v1095, 0.1
  %1098 = vrot.lane.b32.xlu0 %v810, 120
  %v1099 = vpop.permute.xlu0 %1098
  %v1101 = vmul.f32 %v1096, %v1099
  %1103 = vrot.lane.b32.xlu0 %v1101, 96
  %v1104 = vpop.permute.xlu0 %1103
  %v1106 = vadd.f32 %v1082, %v1104
  %1108 = vrot.lane.b32.xlu0 %v1106, 64
  %v1109 = vpop.permute.xlu0 %1108
  %1112 = vrot.lane.b32.xlu0 %v946, 32
  %v1113 = vpop.permute.xlu0 %1112
  %v1115 = vsel %vm142, %v1082, %v1096
  %v1116 = vsel %vm364, %v1115, %v1109
  %v1117 = vsel %vm254, %v1116, %v1113
  %v1118 = vsel %vm142, %v1113, 0.0
  %1119 = vst [vmem:[%s4 + $0x20] sm:$0xff] %v1117
  %1120 = vst [vmem:[%s4 + $0x28] sm:$0xff] %v1118
  %v1121 = vld [vmem:[%s0 + $0x18] sm:$0xff]
  %v1122 = vpack.c.bf16 %v1106, %v1106
  %v1123 = vld [vmem:[%s2 + $0xa0] sm:$0xf]
  %v1124 = vld [vmem:[%s2 + $0xa8] sm:$0xf]
  %v1125 = vld [vmem:[%s2 + $0xb0] sm:$0xf]
  %v1126 = vld [vmem:[%s2 + $0xb8] sm:$0xf]
  %v1131 = vunpack.c.l.b16 %v1123
  %v1132 = vunpack.c.l.b16 %v1124
  %v1133 = vunpack.c.l.b16 %v1125
  %v1134 = vunpack.c.l.b16 %v1126
  %v1135 = vpack.c.b16 %v1132, %v1131
  %v1136 = vpack.c.b16 %v1134, %v1133
  %v1140 = vsel %vm142, %v1122, 0
  %1142 = vmatprep.subr.bf16.mxu0 0
  %1143 = vmatpush1.bf16.msra.mxu0 %v1135
  %1144 = vmatprep.subr.bf16.mxu0 0
  %1145 = vmatpush1.bf16.msra.mxu0 %v1136
  %1146 = vmatprep.subr.bf16.mxu0 0
  %1147 = vmatpush1.bf16.msra.mxu0 0
  %1148 = vmatprep.subr.bf16.mxu0 0
  %1149 = vmatpush1.bf16.msra.mxu0 0
  %1150 = vmatprep.subr.bf16.mxu0 0
  %1151 = vmatpush1.bf16.msra.mxu0 0
  %1152 = vmatprep.subr.bf16.mxu0 0
  %1153 = vmatpush1.bf16.msra.mxu0 0
  %1154 = vmatprep.subr.bf16.mxu0 0
  %1155 = vmatpush1.bf16.msra.mxu0 0
  %1156 = vmatprep.subr.bf16.mxu0 0
  %1157 = vmatpush1.bf16.msra.mxu0 0
  %1158 = vmatprep.subr.bf16.mxu0 0
  %1159 = vmatpush1.bf16.msra.mxu0 0
  %1160 = vmatprep.subr.bf16.mxu0 0
  %1161 = vmatpush1.bf16.msra.mxu0 0
  %1162 = vmatprep.subr.bf16.mxu0 0
  %1163 = vmatpush1.bf16.msra.mxu0 0
  %1164 = vmatprep.subr.bf16.mxu0 0
  %1165 = vmatpush1.bf16.msra.mxu0 0
  %1166 = vmatprep.subr.bf16.mxu0 0
  %1167 = vmatpush1.bf16.msra.mxu0 0
  %1168 = vmatprep.subr.bf16.mxu0 0
  %1169 = vmatpush1.bf16.msra.mxu0 0
  %1170 = vmatprep.subr.bf16.mxu0 0
  %1171 = vmatpush1.bf16.msra.mxu0 0
  %1172 = vmatprep.subr.bf16.mxu0 0
  %1173 = vmatpush1.bf16.msra.mxu0 0
  %1174 = vmatprep.mubr.bf16.mxu0 0
  %1175 = vmatmul.mubr.bf16.gmra.mrb[0].mxu0 %v1140
  %v1176 = vpop.f32.mrb[0].mxu0
  %v1177 = vadd.f32 %v106, %v1176
  %v1178 = vpop.f32.mrb[0].mxu0
  %v1179 = vpop.f32.mrb[0].mxu0
  %v1180 = vpop.f32.mrb[0].mxu0
  %1181 = vdwg.mxu0
  %vm1182 = vcmp.gt.f32.partialorder %v1177, 0.0
  %v1183 = vmin.f32 %v1177, 0.0
  %v1184 = vmul.f32 %v1183, 1.442695
  %v1185 = vpow.pop %v1184
  %v1186 = vsub.f32 %v1185, 1.0
  %v1187 = vsel %vm1182, %v1177, %v1186
  %1188 = vrot.lane.b32.xlu0 %v946, 96
  %v1189 = vpop.permute.xlu0 %1188
  %v1191 = vsel %vm142, %v1187, %v1189
  %v1192 = vpack.c.bf16 %v1191, %v1191
  %v1194 = vsel %vm254, %v1192, 0
  %1196 = vmatprep.subr.bf16.mxu0 %v231
  %1197 = vmatpush1.bf16.msra.mxu0 %v230
  %1198 = vmatprep.subr.bf16.mxu0 %v233
  %1199 = vmatpush1.bf16.msra.mxu0 %v232
  %1200 = vmatprep.subr.bf16.mxu0 %v235
  %1201 = vmatpush1.bf16.msra.mxu0 %v234
  %1202 = vmatprep.subr.bf16.mxu0 %v237
  %1203 = vmatpush1.bf16.msra.mxu0 %v236
  %1204 = vmatprep.subr.bf16.mxu0 %v239
  %1205 = vmatpush1.bf16.msra.mxu0 %v238
  %1206 = vmatprep.subr.bf16.mxu0 %v241
  %1207 = vmatpush1.bf16.msra.mxu0 %v240
  %1208 = vmatprep.subr.bf16.mxu0 0
  %1209 = vmatpush1.bf16.msra.mxu0 0
  %1210 = vmatprep.subr.bf16.mxu0 0
  %1211 = vmatpush1.bf16.msra.mxu0 0
  %1212 = vmatprep.subr.bf16.mxu0 0
  %1213 = vmatpush1.bf16.msra.mxu0 0
  %1214 = vmatprep.subr.bf16.mxu0 0
  %1215 = vmatpush1.bf16.msra.mxu0 0
  %1216 = vmatprep.subr.bf16.mxu0 0
  %1217 = vmatpush1.bf16.msra.mxu0 0
  %1218 = vmatprep.subr.bf16.mxu0 0
  %1219 = vmatpush1.bf16.msra.mxu0 0
  %1220 = vmatprep.subr.bf16.mxu0 0
  %1221 = vmatpush1.bf16.msra.mxu0 0
  %1222 = vmatprep.subr.bf16.mxu0 0
  %1223 = vmatpush1.bf16.msra.mxu0 0
  %1224 = vmatprep.subr.bf16.mxu0 0
  %1225 = vmatpush1.bf16.msra.mxu0 0
  %1226 = vmatprep.subr.bf16.mxu0 0
  %1227 = vmatpush1.bf16.msra.mxu0 0
  %1228 = vmatprep.mubr.bf16.mxu0 0
  %1229 = vmatmul.mubr.bf16.gmra.mrb[0].mxu0 %v1194
  %v1230 = vpop.f32.mrb[0].mxu0
  %v1231 = vadd.f32 0.0, %v1230
  %v1232 = vpop.f32.mrb[0].mxu0
  %v1233 = vadd.f32 0.0, %v1232
  %v1234 = vpop.f32.mrb[0].mxu0
  %v1235 = vpop.f32.mrb[0].mxu0
  %1236 = vdwg.mxu0
  %v1237 = vadd.f32 %v1231, %v121
  %v1238 = vmul.f32 %v1237, 0.5
  %v1239 = vtanh.pop %v1238
  %v1240 = vadd.f32 %v1239, 1.0
  %v1241 = vmul.f32 %v1240, 0.5
  %v1242 = vadd.f32 %v1233, %v122
  %1244 = vrot.lane.b32.xlu0 %v1242, 64
  %v1245 = vpop.permute.xlu0 %1244
  %v1247 = vmul.f32 %v1241, %v1245
  %v1248 = vadd.f32 %v1242, %v1247
  %v1249 = vtanh.pop %v1248
  %v1250 = vsub.f32 1.0, %v1241
  %1252 = vrot.lane.b32.xlu0 %v1249, 64
  %v1253 = vpop.permute.xlu0 %1252
  %v1255 = vmul.f32 %v1250, %v1253
  %v1256 = vmul.f32 %v1241, %v946
  %v1257 = vadd.f32 %v1255, %v1256
  %v1258 = vpack.c.bf16 %v1257, %v1257
  %v1259 = vld [vmem:[%s2 + $0x60] sm:$0xf]
  %v1260 = vld [vmem:[%s2 + $0x68] sm:$0xf]
  %v1261 = vld [vmem:[%s2 + $0x70] sm:$0xf]
  %v1262 = vld [vmem:[%s2 + $0x78] sm:$0xf]
  %v1263 = vld [vmem:[%s2 + $0x80] sm:$0xf]
  %v1264 = vld [vmem:[%s2 + $0x88] sm:$0xf]
  %v1265 = vld [vmem:[%s2 + $0x90] sm:$0xf]
  %v1266 = vld [vmem:[%s2 + $0x98] sm:$0xf]
  %1268 = vrot.lane.b32.xlu0 %v1258, 64
  %v1269 = vpop.permute.xlu0 %1268
  %v1278 = vunpack.c.l.b16 %v1259
  %v1279 = vunpack.c.l.b16 %v1260
  %v1280 = vunpack.c.l.b16 %v1261
  %v1281 = vunpack.c.l.b16 %v1262
  %v1282 = vunpack.c.l.b16 %v1263
  %v1283 = vunpack.c.l.b16 %v1264
  %v1284 = vunpack.c.l.b16 %v1265
  %v1285 = vunpack.c.l.b16 %v1266
  %v1286 = vpack.c.b16 %v1279, %v1278
  %v1287 = vpack.c.b16 %v1281, %v1280
  %v1288 = vpack.c.b16 %v1283, %v1282
  %v1289 = vpack.c.b16 %v1285, %v1284
  %1295 = vrot.lane.b32.xlu0 %v106, 96
  %v1296 = vpop.permute.xlu0 %1295
  %v1299 = vsel %vm364, %v1269, 0
  %1301 = vmatprep.subr.bf16.mxu0 0
  %1302 = vmatpush1.bf16.msra.mxu0 %v1286
  %1303 = vmatprep.subr.bf16.mxu0 0
  %1304 = vmatpush1.bf16.msra.mxu0 %v1287
  %1305 = vmatprep.subr.bf16.mxu0 0
  %1306 = vmatpush1.bf16.msra.mxu0 %v1288
  %1307 = vmatprep.subr.bf16.mxu0 0
  %1308 = vmatpush1.bf16.msra.mxu0 %v1289
  %1309 = vmatprep.subr.bf16.mxu0 0
  %1310 = vmatpush1.bf16.msra.mxu0 0
  %1311 = vmatprep.subr.bf16.mxu0 0
  %1312 = vmatpush1.bf16.msra.mxu0 0
  %1313 = vmatprep.subr.bf16.mxu0 0
  %1314 = vmatpush1.bf16.msra.mxu0 0
  %1315 = vmatprep.subr.bf16.mxu0 0
  %1316 = vmatpush1.bf16.msra.mxu0 0
  %1317 = vmatprep.subr.bf16.mxu0 0
  %1318 = vmatpush1.bf16.msra.mxu0 0
  %1319 = vmatprep.subr.bf16.mxu0 0
  %1320 = vmatpush1.bf16.msra.mxu0 0
  %1321 = vmatprep.subr.bf16.mxu0 0
  %1322 = vmatpush1.bf16.msra.mxu0 0
  %1323 = vmatprep.subr.bf16.mxu0 0
  %1324 = vmatpush1.bf16.msra.mxu0 0
  %1325 = vmatprep.subr.bf16.mxu0 0
  %1326 = vmatpush1.bf16.msra.mxu0 0
  %1327 = vmatprep.subr.bf16.mxu0 0
  %1328 = vmatpush1.bf16.msra.mxu0 0
  %1329 = vmatprep.subr.bf16.mxu0 0
  %1330 = vmatpush1.bf16.msra.mxu0 0
  %1331 = vmatprep.subr.bf16.mxu0 0
  %1332 = vmatpush1.bf16.msra.mxu0 0
  %1333 = vmatprep.mubr.bf16.mxu0 0
  %1334 = vmatmul.mubr.bf16.gmra.mrb[0].mxu0 %v1299
  %v1335 = vpop.f32.mrb[0].mxu0
  %v1336 = vadd.f32 %v1296, %v1335
  %v1337 = vpop.f32.mrb[0].mxu0
  %v1338 = vpop.f32.mrb[0].mxu0
  %v1339 = vpop.f32.mrb[0].mxu0
  %1340 = vdwg.mxu0
  %vm1341 = vcmp.gt.f32.partialorder %v1336, 0.0
  %v1342 = vmin.f32 %v1336, 0.0
  %v1343 = vmul.f32 %v1342, 1.442695
  %v1344 = vpow.pop %v1343
  %v1345 = vsub.f32 %v1344, 1.0
  %v1346 = vsel %vm1341, %v1336, %v1345
  %v1347 = vpack.c.bf16 %v1346, %v1346
  %v1348 = vld [vmem:[%s3 + $0x1] ss:$0 sm:$0xff]
  %1349 = vrot.lane.b32.xlu0 %v1135, 96
  %v1350 = vpop.permute.xlu0 %1349
  %1351 = vrot.lane.b32.xlu0 %v1136, 96
  %v1352 = vpop.permute.xlu0 %1351
  %v1356 = vsel %vm142, %v1347, 0
  %1358 = vmatprep.subr.bf16.mxu0 0
  %1359 = vmatpush1.bf16.msra.mxu0 %v1350
  %1360 = vmatprep.subr.bf16.mxu0 0
  %1361 = vmatpush1.bf16.msra.mxu0 %v1352
  %1362 = vmatprep.subr.bf16.mxu0 0
  %1363 = vmatpush1.bf16.msra.mxu0 0
  %1364 = vmatprep.subr.bf16.mxu0 0
  %1365 = vmatpush1.bf16.msra.mxu0 0
  %1366 = vmatprep.subr.bf16.mxu0 0
  %1367 = vmatpush1.bf16.msra.mxu0 0
  %1368 = vmatprep.subr.bf16.mxu0 0
  %1369 = vmatpush1.bf16.msra.mxu0 0
  %1370 = vmatprep.subr.bf16.mxu0 0
  %1371 = vmatpush1.bf16.msra.mxu0 0
  %1372 = vmatprep.subr.bf16.mxu0 0
  %1373 = vmatpush1.bf16.msra.mxu0 0
  %1374 = vmatprep.subr.bf16.mxu0 0
  %1375 = vmatpush1.bf16.msra.mxu0 0
  %1376 = vmatprep.subr.bf16.mxu0 0
  %1377 = vmatpush1.bf16.msra.mxu0 0
  %1378 = vmatprep.subr.bf16.mxu0 0
  %1379 = vmatpush1.bf16.msra.mxu0 0
  %1380 = vmatprep.subr.bf16.mxu0 0
  %1381 = vmatpush1.bf16.msra.mxu0 0
  %1382 = vmatprep.subr.bf16.mxu0 0
  %1383 = vmatpush1.bf16.msra.mxu0 0
  %1384 = vmatprep.subr.bf16.mxu0 0
  %1385 = vmatpush1.bf16.msra.mxu0 0
  %1386 = vmatprep.subr.bf16.mxu0 0
  %1387 = vmatpush1.bf16.msra.mxu0 0
  %1388 = vmatprep.subr.bf16.mxu0 0
  %1389 = vmatpush1.bf16.msra.mxu0 0
  %1390 = vmatprep.mubr.bf16.mxu0 0
  %1391 = vmatmul.mubr.bf16.gmra.mrb[0].mxu0 %v1356
  %v1392 = vpop.f32.mrb[0].mxu0
  %v1393 = vadd.f32 %v1348, %v1392
  %v1394 = vpop.f32.mrb[0].mxu0
  %v1395 = vpop.f32.mrb[0].mxu0
  %v1396 = vpop.f32.mrb[0].mxu0
  %1397 = vdwg.mxu0
  %v1398 = vmax.f32 %v1393, 0.0
  %v1399 = vand.u32 2147483647, %v1393
  %v1400 = vsub.f32 0.0, %v1399
  %v1401 = vmul.f32 %v1400, 1.442695
  %v1402 = vpow.pop %v1401
  %v1403 = vadd.f32 %v1402, 1.0
  %v1404 = vlog2.pop %v1403
  %v1405 = vmul.f32 %v1404, 0.6931472
  %v1406 = vadd.f32 %v1398, %v1405
  %v1407 = vadd.f32 %v1406, 0.1
  %1409 = vrot.lane.b32.xlu0 %v1121, 120
  %v1410 = vpop.permute.xlu0 %1409
  %v1412 = vmul.f32 %v1407, %v1410
  %1414 = vrot.lane.b32.xlu0 %v1412, 96
  %v1415 = vpop.permute.xlu0 %1414
  %v1417 = vadd.f32 %v1393, %v1415
  %1419 = vrot.lane.b32.xlu0 %v1417, 64
  %v1420 = vpop.permute.xlu0 %1419
  %1423 = vrot.lane.b32.xlu0 %v1257, 32
  %v1424 = vpop.permute.xlu0 %1423
  %v1426 = vsel %vm142, %v1393, %v1407
  %v1427 = vsel %vm364, %v1426, %v1420
  %v1428 = vsel %vm254, %v1427, %v1424
  %v1429 = vsel %vm142, %v1424, 0.0
  %1430 = vst [vmem:[%s4 + $0x30] sm:$0xff] %v1428
  %1431 = vst [vmem:[%s4 + $0x38] sm:$0xff] %v1429
  %v1432 = vld [vmem:[%s0] sm:$0xff]
  %v1433 = vld [vmem:[%s0 + $0x8] sm:$0xff]
  %v1434 = vld [vmem:[%s0 + $0x10] sm:$0xff]
  %v1435 = vld [vmem:[%s0 + $0x18] sm:$0xff]
  %v1436 = vld [vmem:[%s2 + $0x60] sm:$0xf]
  %v1437 = vld [vmem:[%s2 + $0x68] sm:$0xf]
  %v1438 = vld [vmem:[%s2 + $0x70] sm:$0xf]
  %v1439 = vld [vmem:[%s2 + $0x78] sm:$0xf]
  %v1440 = vld [vmem:[%s2 + $0x80] sm:$0xf]
  %v1441 = vld [vmem:[%s2 + $0x88] sm:$0xf]
  %v1442 = vld [vmem:[%s2 + $0x90] sm:$0xf]
  %v1443 = vld [vmem:[%s2 + $0x98] sm:$0xf]
  %v1444 = vld [vmem:[%s2 + $0xa0] sm:$0xff]
  %v1445 = vld [vmem:[%s2 + $0xa8] sm:$0xff]
  %v1446 = vld [vmem:[%s2 + $0xb0] sm:$0xff]
  %v1447 = vld [vmem:[%s2 + $0xb8] sm:$0xff]
  %v1448 = vld [vmem:[%s3 + $0x1] ss:$0 sm:$0xff]
  %v1449 = vld [vmem:[%s3 + $0x1] ss:$0 sm:$0xff]
  %v1450 = vld [vmem:[%s3 + $0x9] ss:$0 sm:$0xff]
  %v1451 = vpack.c.bf16 %v635, %v323
  %v1452 = vpack.c.bf16 %v1257, %v946
  %1455 = vrot.lane.b32.xlu0 %v1451, 64
  %v1456 = vpop.permute.xlu0 %1455
  %1457 = vrot.lane.b32.xlu0 %v1452, 64
  %v1458 = vpop.permute.xlu0 %1457
  %v1467 = vunpack.c.l.b16 %v1436
  %v1468 = vunpack.c.l.b16 %v1437
  %v1469 = vunpack.c.l.b16 %v1438
  %v1470 = vunpack.c.l.b16 %v1439
  %v1471 = vunpack.c.l.b16 %v1440
  %v1472 = vunpack.c.l.b16 %v1441
  %v1473 = vunpack.c.l.b16 %v1442
  %v1474 = vunpack.c.l.b16 %v1443
  %v1475 = vpack.c.b16 %v1468, %v1467
  %v1476 = vpack.c.b16 %v1470, %v1469
  %v1477 = vpack.c.b16 %v1472, %v1471
  %v1478 = vpack.c.b16 %v1474, %v1473
  %1479 = vrot.lane.b32.xlu0 %v1475, 96
  %v1480 = vpop.permute.xlu0 %1479
  %1481 = vrot.lane.b32.xlu0 %v1476, 96
  %v1482 = vpop.permute.xlu0 %1481
  %1483 = vrot.lane.b32.xlu0 %v1477, 96
  %v1484 = vpop.permute.xlu0 %1483
  %1485 = vrot.lane.b32.xlu0 %v1478, 96
  %v1486 = vpop.permute.xlu0 %1485
  %1492 = vrot.lane.b32.xlu0 %v1448, 64
  %v1493 = vpop.permute.xlu0 %1492
  %v1496 = vsel %vm364, %v1456, 0
  %v1499 = vsel %vm364, %v1458, 0
  %1501 = vmatprep.subr.bf16.mxu0 0
  %1502 = vmatpush1.bf16.msra.mxu0 %v1480
  %1503 = vmatprep.subr.bf16.mxu0 0
  %1504 = vmatpush1.bf16.msra.mxu0 %v1482
  %1505 = vmatprep.subr.bf16.mxu0 0
  %1506 = vmatpush1.bf16.msra.mxu0 %v1484
  %1507 = vmatprep.subr.bf16.mxu0 0
  %1508 = vmatpush1.bf16.msra.mxu0 %v1486
  %1509 = vmatprep.subr.bf16.mxu0 0
  %1510 = vmatpush1.bf16.msra.mxu0 0
  %1511 = vmatprep.subr.bf16.mxu0 0
  %1512 = vmatpush1.bf16.msra.mxu0 0
  %1513 = vmatprep.subr.bf16.mxu0 0
  %1514 = vmatpush1.bf16.msra.mxu0 0
  %1515 = vmatprep.subr.bf16.mxu0 0
  %1516 = vmatpush1.bf16.msra.mxu0 0
  %1517 = vmatprep.subr.bf16.mxu0 0
  %1518 = vmatpush1.bf16.msra.mxu0 0
  %1519 = vmatprep.subr.bf16.mxu0 0
  %1520 = vmatpush1.bf16.msra.mxu0 0
  %1521 = vmatprep.subr.bf16.mxu0 0
  %1522 = vmatpush1.bf16.msra.mxu0 0
  %1523 = vmatprep.subr.bf16.mxu0 0
  %1524 = vmatpush1.bf16.msra.mxu0 0
  %1525 = vmatprep.subr.bf16.mxu0 0
  %1526 = vmatpush1.bf16.msra.mxu0 0
  %1527 = vmatprep.subr.bf16.mxu0 0
  %1528 = vmatpush1.bf16.msra.mxu0 0
  %1529 = vmatprep.subr.bf16.mxu0 0
  %1530 = vmatpush1.bf16.msra.mxu0 0
  %1531 = vmatprep.subr.bf16.mxu0 0
  %1532 = vmatpush1.bf16.msra.mxu0 0
  %1533 = vmatprep.mubr.bf16.mxu0 0
  %1534 = vmatmul.mubr.bf16.gmra.mrb[0].mxu0 %v1496
  %v1535 = vpop.f32.mrb[0].mxu0
  %v1536 = vadd.f32 %v1493, %v1535
  %v1537 = vpop.f32.mrb[0].mxu0
  %v1538 = vpop.f32.mrb[0].mxu0
  %v1539 = vadd.f32 %v1493, %v1538
  %v1540 = vpop.f32.mrb[0].mxu0
  %1541 = vmatprep.mubr.bf16.mxu0 0
  %1542 = vmatmul.mubr.bf16.gmra.mrb[0].mxu0 %v1499
  %v1543 = vpop.f32.mrb[0].mxu0
  %v1544 = vadd.f32 %v1493, %v1543
  %v1545 = vpop.f32.mrb[0].mxu0
  %v1546 = vpop.f32.mrb[0].mxu0
  %v1547 = vadd.f32 %v1493, %v1546
  %v1548 = vpop.f32.mrb[0].mxu0
  %1549 = vdwg.mxu0
  %vm1550 = vcmp.gt.f32.partialorder %v1536, 0.0
  %vm1551 = vcmp.gt.f32.partialorder %v1539, 0.0
  %vm1552 = vcmp.gt.f32.partialorder %v1544, 0.0
  %vm1553 = vcmp.gt.f32.partialorder %v1547, 0.0
  %v1554 = vmin.f32 %v1536, 0.0
  %v1555 = vmin.f32 %v1539, 0.0
  %v1556 = vmin.f32 %v1544, 0.0
  %v1557 = vmin.f32 %v1547, 0.0
  %v1558 = vmul.f32 %v1554, 1.442695
  %v1559 = vpow.pop %v1558
  %v1560 = vmul.f32 %v1555, 1.442695
  %v1561 = vpow.pop %v1560
  %v1562 = vmul.f32 %v1556, 1.442695
  %v1563 = vpow.pop %v1562
  %v1564 = vmul.f32 %v1557, 1.442695
  %v1565 = vpow.pop %v1564
  %v1566 = vsub.f32 %v1559, 1.0
  %v1567 = vsub.f32 %v1561, 1.0
  %v1568 = vsub.f32 %v1563, 1.0
  %v1569 = vsub.f32 %v1565, 1.0
  %v1570 = vsel %vm1550, %v1536, %v1566
  %v1571 = vsel %vm1551, %v1539, %v1567
  %v1572 = vsel %vm1552, %v1544, %v1568
  %v1573 = vsel %vm1553, %v1547, %v1569
  %v1574 = vpack.c.bf16 %v1571, %v1570
  %v1575 = vpack.c.bf16 %v1573, %v1572
  %v1580 = vunpack.c.l.b16 %v1444
  %v1581 = vunpack.c.h.b16 %v1444
  %v1582 = vunpack.c.l.b16 %v1445
  %v1583 = vunpack.c.h.b16 %v1445
  %v1584 = vunpack.c.l.b16 %v1446
  %v1585 = vunpack.c.h.b16 %v1446
  %v1586 = vunpack.c.l.b16 %v1447
  %v1587 = vunpack.c.h.b16 %v1447
  %v1588 = vpack.c.b16 %v1582, %v1580
  %v1589 = vpack.c.b16 %v1583, %v1581
  %v1590 = vpack.c.b16 %v1586, %v1584
  %v1591 = vpack.c.b16 %v1587, %v1585
  %1592 = vrot.lane.b32.xlu0 %v1588, 32
  %v1593 = vpop.permute.xlu0 %1592
  %1594 = vrot.lane.b32.xlu0 %v1589, 32
  %v1595 = vpop.permute.xlu0 %1594
  %1596 = vrot.lane.b32.xlu0 %v1590, 32
  %v1597 = vpop.permute.xlu0 %1596
  %1598 = vrot.lane.b32.xlu0 %v1591, 32
  %v1599 = vpop.permute.xlu0 %1598
  %vm1600 = vcmask 261120
  %v1601 = vsel %vm1600, %v1593, %v1595
  %v1602 = vsel %vm1600, %v1597, %v1599
  %1607 = vrot.lane.b32.xlu0 %v1449, 32
  %v1608 = vpop.permute.xlu0 %1607
  %1609 = vrot.lane.b32.xlu0 %v1450, 32
  %v1610 = vpop.permute.xlu0 %1609
  %v1611 = vsel %vm142, %v1608, %v1610
  %v1614 = vsel %vm142, %v1574, 0
  %v1617 = vsel %vm142, %v1575, 0
  %1619 = vmatprep.subr.bf16.mxu0 0
  %1620 = vmatpush1.bf16.msra.mxu0 %v1601
  %1621 = vmatprep.subr.bf16.mxu0 0
  %1622 = vmatpush1.bf16.msra.mxu0 %v1602
  %1623 = vmatprep.subr.bf16.mxu0 0
  %1624 = vmatpush1.bf16.msra.mxu0 0
  %1625 = vmatprep.subr.bf16.mxu0 0
  %1626 = vmatpush1.bf16.msra.mxu0 0
  %1627 = vmatprep.subr.bf16.mxu0 0
  %1628 = vmatpush1.bf16.msra.mxu0 0
  %1629 = vmatprep.subr.bf16.mxu0 0
  %1630 = vmatpush1.bf16.msra.mxu0 0
  %1631 = vmatprep.subr.bf16.mxu0 0
  %1632 = vmatpush1.bf16.msra.mxu0 0
  %1633 = vmatprep.subr.bf16.mxu0 0
  %1634 = vmatpush1.bf16.msra.mxu0 0
  %1635 = vmatprep.subr.bf16.mxu0 0
  %1636 = vmatpush1.bf16.msra.mxu0 0
  %1637 = vmatprep.subr.bf16.mxu0 0
  %1638 = vmatpush1.bf16.msra.mxu0 0
  %1639 = vmatprep.subr.bf16.mxu0 0
  %1640 = vmatpush1.bf16.msra.mxu0 0
  %1641 = vmatprep.subr.bf16.mxu0 0
  %1642 = vmatpush1.bf16.msra.mxu0 0
  %1643 = vmatprep.subr.bf16.mxu0 0
  %1644 = vmatpush1.bf16.msra.mxu0 0
  %1645 = vmatprep.subr.bf16.mxu0 0
  %1646 = vmatpush1.bf16.msra.mxu0 0
  %1647 = vmatprep.subr.bf16.mxu0 0
  %1648 = vmatpush1.bf16.msra.mxu0 0
  %1649 = vmatprep.subr.bf16.mxu0 0
  %1650 = vmatpush1.bf16.msra.mxu0 0
  %1651 = vmatprep.mubr.bf16.mxu0 0
  %1652 = vmatmul.mubr.bf16.gmra.mrb[0].mxu0 %v1614
  %v1653 = vpop.f32.mrb[0].mxu0
  %v1654 = vadd.f32 %v1611, %v1653
  %v1655 = vpop.f32.mrb[0].mxu0
  %v1656 = vpop.f32.mrb[0].mxu0
  %v1657 = vadd.f32 %v1611, %v1656
  %v1658 = vpop.f32.mrb[0].mxu0
  %1659 = vmatprep.mubr.bf16.mxu0 0
  %1660 = vmatmul.mubr.bf16.gmra.mrb[0].mxu0 %v1617
  %v1661 = vpop.f32.mrb[0].mxu0
  %v1662 = vadd.f32 %v1611, %v1661
  %v1663 = vpop.f32.mrb[0].mxu0
  %v1664 = vpop.f32.mrb[0].mxu0
  %v1665 = vadd.f32 %v1611, %v1664
  %v1666 = vpop.f32.mrb[0].mxu0
  %1667 = vdwg.mxu0
  %v1668 = vmax.f32 %v1654, 0.0
  %v1669 = vmax.f32 %v1657, 0.0
  %v1670 = vmax.f32 %v1662, 0.0
  %v1671 = vmax.f32 %v1665, 0.0
  %v1672 = vand.u32 2147483647, %v1654
  %v1673 = vand.u32 2147483647, %v1657
  %v1674 = vand.u32 2147483647, %v1662
  %v1675 = vand.u32 2147483647, %v1665
  %v1676 = vsub.f32 0.0, %v1672
  %v1677 = vsub.f32 0.0, %v1673
  %v1678 = vsub.f32 0.0, %v1674
  %v1679 = vsub.f32 0.0, %v1675
  %v1680 = vmul.f32 %v1676, 1.442695
  %v1681 = vpow.pop %v1680
  %v1682 = vmul.f32 %v1677, 1.442695
  %v1683 = vpow.pop %v1682
  %v1684 = vmul.f32 %v1678, 1.442695
  %v1685 = vpow.pop %v1684
  %v1686 = vmul.f32 %v1679, 1.442695
  %v1687 = vpow.pop %v1686
  %v1688 = vadd.f32 %v1681, 1.0
  %v1689 = vadd.f32 %v1683, 1.0
  %v1690 = vadd.f32 %v1685, 1.0
  %v1691 = vadd.f32 %v1687, 1.0
  %v1692 = vlog2.pop %v1688
  %v1693 = vmul.f32 %v1692, 0.6931472
  %v1694 = vlog2.pop %v1689
  %v1695 = vmul.f32 %v1694, 0.6931472
  %v1696 = vlog2.pop %v1690
  %v1697 = vmul.f32 %v1696, 0.6931472
  %v1698 = vlog2.pop %v1691
  %v1699 = vmul.f32 %v1698, 0.6931472
  %v1700 = vadd.f32 %v1668, %v1693
  %v1701 = vadd.f32 %v1669, %v1695
  %v1702 = vadd.f32 %v1670, %v1697
  %v1703 = vadd.f32 %v1671, %v1699
  %v1704 = vadd.f32 %v1700, 0.1
  %v1705 = vadd.f32 %v1701, 0.1
  %v1706 = vadd.f32 %v1702, 0.1
  %v1707 = vadd.f32 %v1703, 0.1
  %1712 = vrot.lane.b32.xlu0 %v1432, 88
  %v1713 = vpop.permute.xlu0 %1712
  %1714 = vrot.lane.b32.xlu0 %v1433, 88
  %v1715 = vpop.permute.xlu0 %1714
  %1716 = vrot.lane.b32.xlu0 %v1434, 88
  %v1717 = vpop.permute.xlu0 %1716
  %1718 = vrot.lane.b32.xlu0 %v1435, 88
  %v1719 = vpop.permute.xlu0 %1718
  %v1724 = vmul.f32 %v1704, %v1713
  %v1725 = vmul.f32 %v1705, %v1715
  %v1726 = vmul.f32 %v1706, %v1717
  %v1727 = vmul.f32 %v1707, %v1719
  %1732 = vrot.lane.b32.xlu0 %v1724, 96
  %v1733 = vpop.permute.xlu0 %1732
  %1734 = vrot.lane.b32.xlu0 %v1725, 96
  %v1735 = vpop.permute.xlu0 %1734
  %1736 = vrot.lane.b32.xlu0 %v1726, 96
  %v1737 = vpop.permute.xlu0 %1736
  %1738 = vrot.lane.b32.xlu0 %v1727, 96
  %v1739 = vpop.permute.xlu0 %1738
  %v1744 = vadd.f32 %v1654, %v1733
  %v1745 = vadd.f32 %v1657, %v1735
  %v1746 = vadd.f32 %v1662, %v1737
  %v1747 = vadd.f32 %v1665, %v1739
  %1752 = vrot.lane.b32.xlu0 %v1744, 64
  %v1753 = vpop.permute.xlu0 %1752
  %1754 = vrot.lane.b32.xlu0 %v1745, 64
  %v1755 = vpop.permute.xlu0 %1754
  %1756 = vrot.lane.b32.xlu0 %v1746, 64
  %v1757 = vpop.permute.xlu0 %1756
  %1758 = vrot.lane.b32.xlu0 %v1747, 64
  %v1759 = vpop.permute.xlu0 %1758
  %v1764 = vsel %vm142, %v1654, %v1704
  %v1765 = vsel %vm142, %v1657, %v1705
  %v1766 = vsel %vm142, %v1662, %v1706
  %v1767 = vsel %vm142, %v1665, %v1707
  %v1768 = vsel %vm364, %v1764, %v1753
  %v1769 = vsel %vm364, %v1765, %v1755
  %v1770 = vsel %vm364, %v1766, %v1757
  %v1771 = vsel %vm364, %v1767, %v1759
  %1776 = vrot.lane.b32.xlu0 %v1768, 32
  %v1777 = vpop.permute.xlu0 %1776
  %1778 = vrot.lane.b32.xlu0 %v1769, 32
  %v1779 = vpop.permute.xlu0 %1778
  %1780 = vrot.lane.b32.xlu0 %v1770, 32
  %v1781 = vpop.permute.xlu0 %1780
  %1782 = vrot.lane.b32.xlu0 %v1771, 32
  %v1783 = vpop.permute.xlu0 %1782
  %vm1788 = vcmask 1047808
  %1789 = vst.msk [vmem:[%s4 + $0x8] sm:$0xff] %vm1788, %v1777
  %1790 = vst.msk [vmem:[%s4 + $0x18] sm:$0xff] %vm1788, %v1779
  %1791 = vst.msk [vmem:[%s4 + $0x28] sm:$0xff] %vm1788, %v1781
  %1792 = vst.msk [vmem:[%s4 + $0x38] sm:$0xff] %vm1788, %v1783
  // Predicated region
  $region18: #{representation_iterator.1} parent=0 // pred_check
    _
  $region19: #{representation_iterator.1} parent=0 // pred_check_branch
    %1794 = sbr.rel (0) target = $region21
  $region20: #{representation_iterator.1} parent=0 // pred_region
    _
  $region21: #{representation_iterator.1} parent=0 // pred_fallthru
    _
  // Predicated region
  $region22: #{representation_iterator.1} parent=0 // pred_check
    _
  $region23: #{representation_iterator.1} parent=0 // pred_check_branch
    %1796 = sbr.rel (0) target = $region25
  $region24: #{representation_iterator.1} parent=0 // pred_region
    _
  $region25: #{representation_iterator.1} parent=0 // pred_fallthru
    _

</llo_original>
